<compile_context>
chip_gen: v5e
topology: v5e:2x2
jax: 0.10.0
libtpu: 0.0.40
codegen_flags: <defaults>
</compile_context>

<pallas_src>
import jax
import jax.numpy as jnp
from jax.experimental import pallas as pl
from jax.experimental.pallas import tpu as pltpu


def _vmem_limit_bytes():
    """Per-generation scoped-VMEM budget (headroom below physical capacity)."""
    cap = 64 * 1024 * 1024
    try:
        cap = int(pltpu.get_tpu_info().vmem_capacity_bytes)
    except Exception:
        pass
    cap = max(64 * 1024 * 1024, min(cap, 128 * 1024 * 1024))
    # v7x (64 MiB physical) -> 52 MiB; v5e/v6e (128 MiB) -> 112 MiB.
    return int(min(cap - 12 * 1024 * 1024, 112 * 1024 * 1024))


def _pick_tq(n, c, c8, vmem_limit):
    """Largest query tile whose per-step working set fits the VMEM budget."""
    budget = int(vmem_limit * 0.75)
    # Double-buffered bf16 K^T + V blocks stay resident across query tiles.
    resident = 2 * 2 * (c8 * n + n * c)
    for t in (512, 256, 128, 64, 32, 16, 8):
        if n % t:
            continue
        per_tile = (2 * t * n * 4        # attention out tile (double buffered)
                    + 3 * t * n * 4      # energy / p / attn f32 temporaries
                    + 4 * t * c * 4)     # x-in + out tiles (double buffered)
        if resident + per_tile <= budget:
            return t
    return 8 if n % 8 == 0 else n


def _pick_tp(n):
    """Pixel tile for the K^T/V projection pass (lane dim: x128 or full)."""
    for t in (512, 256, 128):
        if n % t == 0:
            return t
    return n


def _kv_project_kernel(x_cn_ref, x_nc_ref, wkT_ref, bk_ref, wv_ref, bv_ref,
                       kT_ref, v_ref):
    """One (batch b, pixel tile p) projection step.

    x_cn_ref: (C, TP)  f32   NCHW view (lane-dense on pixels)
    x_nc_ref: (TP, C)  f32
    wkT_ref:  (C8, C)  bf16  key weight stored (out, in)
    bk_ref:   (C8, 1)  f32
    wv_ref:   (C, C)   bf16  value weight stored (in, out)
    bv_ref:   (1, C)   f32
    kT_ref:   (C8, TP) bf16  out (K transposed, lane-dense)
    v_ref:    (TP, C)  bf16  out
    """
    kT = jnp.dot(wkT_ref[...], x_cn_ref[...].astype(jnp.bfloat16),
                 preferred_element_type=jnp.float32) + bk_ref[...]
    kT_ref[...] = kT.astype(jnp.bfloat16)
    v = jnp.dot(x_nc_ref[...].astype(jnp.bfloat16), wv_ref[...],
                preferred_element_type=jnp.float32) + bv_ref[...]
    v_ref[...] = v.astype(jnp.bfloat16)


def _attention_kernel(x_ref, wq_ref, bq_ref, kT_ref, v_ref, gamma_ref,
                      out_ref, attn_ref):
    """One (batch b, query tile qi) step — fully parallel across both grid axes.

    x_ref:     (TQ, C)  f32   query tile of x (residual + Q-projection input)
    wq_ref:    (C, C8)  bf16
    bq_ref:    (1, C8)  f32
    kT_ref:    (C8, N)  bf16  whole batch element (revisited: DMA'd once per b)
    v_ref:     (N, C)   bf16  whole batch element (revisited)
    gamma_ref: (1,)     f32   SMEM scalar
    out_ref:   (TQ, C)  f32
    attn_ref:  (TQ, N)  f32
    """
    x = x_ref[...]                                                    # (TQ, C) f32

    # Per-tile Q projection (the heavy K/V projection was hoisted to stage 1).
    q = jnp.dot(x.astype(jnp.bfloat16), wq_ref[...],
                preferred_element_type=jnp.float32) + bq_ref[...]     # (TQ, C8)

    # energy[i, j] = q_i . k_j   (== torch.bmm(proj_query, proj_key))
    energy = jnp.dot(q.astype(jnp.bfloat16), kT_ref[...],
                     preferred_element_type=jnp.float32)              # (TQ, N) f32

    # Row softmax (dim=-1): f32 statistics; exact reciprocal since `attention`
    # is a returned output (rows must sum to 1).
    m = jnp.max(energy, axis=-1, keepdims=True)
    p = jnp.exp(energy - m)
    attn = p * pl.reciprocal(jnp.sum(p, axis=-1, keepdims=True))

    # out[i, c] = sum_j attn[i, j] * v[j, c]  (== value @ attention^T in NCHW)
    out = jnp.dot(attn.astype(jnp.bfloat16), v_ref[...],
                  preferred_element_type=jnp.float32)                 # (TQ, C) f32

    out_ref[...] = gamma_ref[0] * out + x
    attn_ref[...] = attn


def self_attention_pallas(x_nchw, wq, bq, wk, bk, wv, bv, gamma):
    """x_nchw: (B, C, W, H) f32.  Conv2d(k=1) weights stored transposed:
       wq/wk: (C, C//8), wv: (C, C); biases bq/bk: (1, C//8), bv: (1, C);
       gamma: (1,).  Returns (out NCHW, attention (B, N, N))."""
    B, C, W, H = x_nchw.shape
    N = W * H
    C8 = wq.shape[1]

    vmem_limit = _vmem_limit_bytes()
    TQ = _pick_tq(N, C, C8, vmem_limit)
    n_q = N // TQ
    TP = _pick_tp(N)
    n_p = N // TP

    x_bcn = x_nchw.reshape(B, C, N)                     # NCHW view, no copy needed
    x_bnc = jnp.transpose(x_bcn, (0, 2, 1))             # (B, N, C)

    wq_bf = wq.astype(jnp.bfloat16)                     # (C, C8)
    bq_f = bq.astype(jnp.float32).reshape(1, C8)
    wkT_bf = jnp.transpose(wk).astype(jnp.bfloat16)     # (C8, C)
    bk_col = bk.astype(jnp.float32).reshape(C8, 1)
    wv_bf = wv.astype(jnp.bfloat16)                     # (C, C)
    bv_f = bv.astype(jnp.float32).reshape(1, C)
    gamma1 = jnp.reshape(gamma, (1,)).astype(jnp.float32)

    # ---- Stage 1: per-batch K^T / V projection (tiny vs the attention pass).
    kT_all, v_all = pl.pallas_call(
        _kv_project_kernel,
        out_shape=(
            jax.ShapeDtypeStruct((B, C8, N), jnp.bfloat16),
            jax.ShapeDtypeStruct((B, N, C), jnp.bfloat16),
        ),
        grid=(B, n_p),
        in_specs=[
            pl.BlockSpec((None, C, TP), lambda b, p: (b, 0, p)),   # x (C, TP)
            pl.BlockSpec((None, TP, C), lambda b, p: (b, p, 0)),   # x (TP, C)
            pl.BlockSpec((C8, C), lambda b, p: (0, 0)),            # Wk^T
            pl.BlockSpec((C8, 1), lambda b, p: (0, 0)),            # bk
            pl.BlockSpec((C, C), lambda b, p: (0, 0)),             # Wv
            pl.BlockSpec((1, C), lambda b, p: (0, 0)),             # bv
        ],
        out_specs=(
            pl.BlockSpec((None, C8, TP), lambda b, p: (b, 0, p)),  # K^T
            pl.BlockSpec((None, TP, C), lambda b, p: (b, p, 0)),   # V
        ),
        compiler_params=pltpu.CompilerParams(
            dimension_semantics=("parallel", "parallel"),
            vmem_limit_bytes=vmem_limit,
        ),
    )(x_bcn, x_bnc, wkT_bf, bk_col, wv_bf, bv_f)

    # ---- Stage 2: attention + softmax + residual, tiled over queries.
    cost = pl.CostEstimate(
        flops=int(2 * B * N * C * C8 + 2 * B * N * N * (C8 + C)),
        transcendentals=int(B * N * N),
        bytes_accessed=int(
            4 * B * N * C                   # x query tiles (f32)
            + 2 * B * N * (C8 + C)          # bf16 K^T / V reads
            + 4 * B * N * C                 # out (f32)
            + 4 * B * N * N                 # attention writeback (roofline term)
        ),
    )

    out_bnc, attn = pl.pallas_call(
        _attention_kernel,
        out_shape=(
            jax.ShapeDtypeStruct((B, N, C), jnp.float32),
            jax.ShapeDtypeStruct((B, N, N), jnp.float32),
        ),
        grid=(B, n_q),
        in_specs=[
            pl.BlockSpec((None, TQ, C), lambda b, q: (b, q, 0)),   # x query tile
            pl.BlockSpec((C, C8), lambda b, q: (0, 0)),            # Wq
            pl.BlockSpec((1, C8), lambda b, q: (0, 0)),            # bq
            pl.BlockSpec((None, C8, N), lambda b, q: (b, 0, 0)),   # K^T (per batch)
            pl.BlockSpec((None, N, C), lambda b, q: (b, 0, 0)),    # V   (per batch)
            pl.BlockSpec(memory_space=pltpu.MemorySpace.SMEM),     # gamma scalar
        ],
        out_specs=(
            pl.BlockSpec((None, TQ, C), lambda b, q: (b, q, 0)),   # out tile
            pl.BlockSpec((None, TQ, N), lambda b, q: (b, q, 0)),   # attn tile
        ),
        compiler_params=pltpu.CompilerParams(
            # No per-batch scratch is carried anymore -> both axes are safe to
            # shard across TensorCores (helps v7x even when B is 1).
            dimension_semantics=("parallel", "parallel"),
            vmem_limit_bytes=vmem_limit,
        ),
        cost_estimate=cost,
    )(x_bnc, wq_bf, bq_f, kT_all, v_all, gamma1)

    out_nchw = jnp.transpose(out_bnc, (0, 2, 1)).reshape(B, C, W, H)
    return out_nchw, attn


def _reference(x_nchw, wq, bq, wk, bk, wv, bv, gamma):
    """Pure-jnp f32 reference mirroring the PyTorch forward."""
    B, C, W, H = x_nchw.shape
    N = W * H
    x_bnc = jnp.transpose(x_nchw.reshape(B, C, N), (0, 2, 1))        # (B, N, C)
    q = x_bnc @ wq + bq                                              # (B, N, C8)
    k = x_bnc @ wk + bk                                              # (B, N, C8)
    v = x_bnc @ wv + bv                                              # (B, N, C)
    energy = jnp.einsum("bic,bjc->bij", q, k)                        # (B, N, N)
    attn = jax.nn.softmax(energy, axis=-1)
    out = jnp.einsum("bij,bjc->bic", attn, v)                        # (B, N, C)
    out = gamma[0] * out + x_bnc
    out_nchw = jnp.transpose(out, (0, 2, 1)).reshape(B, C, W, H)
    return out_nchw, attn


if __name__ == "__main__":
    # Small shapes consistent with the module: in_dim must be >= 8 (C // 8 >= 1).
    B, C, W, H = 2, 16, 8, 8
    C8 = C // 8

    key = jax.random.PRNGKey(0)
    kx, kwq, kbq, kwk, kbk, kwv, kbv = jax.random.split(key, 7)

    x = jax.random.normal(kx, (B, C, W, H), dtype=jnp.float32)

    # Conv2d(kernel_size=1) weights are (out, in, 1, 1); store as (in, out) = W.T.
    scale = 1.0 / jnp.sqrt(jnp.float32(C))
    wq = jax.random.uniform(kwq, (C, C8), jnp.float32, -scale, scale)
    bq = jax.random.uniform(kbq, (1, C8), jnp.float32, -scale, scale)
    wk = jax.random.uniform(kwk, (C, C8), jnp.float32, -scale, scale)
    bk = jax.random.uniform(kbk, (1, C8), jnp.float32, -scale, scale)
    wv = jax.random.uniform(kwv, (C, C), jnp.float32, -scale, scale)
    bv = jax.random.uniform(kbv, (1, C), jnp.float32, -scale, scale)
    # Module initializes gamma = 0; use a nonzero value here so the attention
    # path actually contributes to `out` (semantics identical either way).
    gamma = jnp.full((1,), 0.5, dtype=jnp.float32)

    out, attn = jax.jit(self_attention_pallas)(x, wq, bq, wk, bk, wv, bv, gamma)
    out = jax.block_until_ready(out)
    attn = jax.block_until_ready(attn)

    out_ref, attn_ref = _reference(x, wq, bq, wk, bk, wv, bv, gamma)
    assert out.shape == (B, C, W, H) and attn.shape == (B, W * H, W * H)
    # bf16 MXU matmuls => loosened tolerances vs the f32 reference.
    assert jnp.allclose(out, out_ref, atol=2e-2, rtol=2e-2), \
        float(jnp.max(jnp.abs(out - out_ref)))
    assert jnp.allclose(attn, attn_ref, atol=3e-3, rtol=3e-2), \
        float(jnp.max(jnp.abs(attn - attn_ref)))

    print("KERNEL_OK")
</pallas_src>

<mosaic_0001>
module attributes {stable_mosaic.version = 11 : i64} {
  func.func @_kv_project_kernel(%arg0: i32, %arg1: i32, %arg2: memref<1x16x64xf32, #tpu.memory_space<vmem>>, %arg3: memref<1x64x16xf32, #tpu.memory_space<vmem>>, %arg4: memref<2x16xbf16, #tpu.memory_space<vmem>>, %arg5: memref<2x1xf32, #tpu.memory_space<vmem>>, %arg6: memref<16x16xbf16, #tpu.memory_space<vmem>>, %arg7: memref<1x16xf32, #tpu.memory_space<vmem>>, %arg8: memref<1x2x64xbf16, #tpu.memory_space<vmem>>, %arg9: memref<1x64x16xbf16, #tpu.memory_space<vmem>>) attributes {dimension_semantics = [#tpu.dimension_semantics<parallel>, #tpu.dimension_semantics<parallel>], iteration_bounds = array<i64: 2, 1>, scalar_prefetch = 0 : i64, scratch_operands = 0 : i64, tpu.core_type = #tpu.core_type<tc>, window_params = [{transform_indices = @transform_0, window_bounds = array<i64: 1, 16, 64>}, {transform_indices = @transform_1, window_bounds = array<i64: 1, 64, 16>}, {pipeline_mode = #tpu.pipeline_mode<synchronous>, transform_indices = @transform_2, window_bounds = array<i64: 2, 16>}, {pipeline_mode = #tpu.pipeline_mode<synchronous>, transform_indices = @transform_3, window_bounds = array<i64: 2, 1>}, {pipeline_mode = #tpu.pipeline_mode<synchronous>, transform_indices = @transform_4, window_bounds = array<i64: 16, 16>}, {pipeline_mode = #tpu.pipeline_mode<synchronous>, transform_indices = @transform_5, window_bounds = array<i64: 1, 16>}, {transform_indices = @transform_6, window_bounds = array<i64: 1, 2, 64>}, {transform_indices = @transform_7, window_bounds = array<i64: 1, 64, 16>}]} {
    %c0 = arith.constant 0 : index
    %c0_0 = arith.constant 0 : index
    %0 = vector.load %arg4[%c0, %c0_0] : memref<2x16xbf16, #tpu.memory_space<vmem>>, vector<2x16xbf16>
    %c0_1 = arith.constant 0 : index
    %c0_2 = arith.constant 0 : index
    %c0_3 = arith.constant 0 : index
    %1 = vector.load %arg2[%c0_1, %c0_2, %c0_3] : memref<1x16x64xf32, #tpu.memory_space<vmem>>, vector<1x16x64xf32>
    %2 = vector.shape_cast %1 : vector<1x16x64xf32> to vector<16x64xf32>
    %3 = arith.truncf %2 : vector<16x64xf32> to vector<16x64xbf16>
    %cst = arith.constant dense<0.000000e+00> : vector<2x64xf32>
    %4 = tpu.matmul %0, %3, %cst {dimension_numbers = #tpu.dot_dimension_numbers<[1], [0], [0], [1], [0, 0, 1, 1], [], []>} : vector<2x16xbf16>, vector<16x64xbf16>, vector<2x64xf32> -> vector<2x64xf32>
    %c0_4 = arith.constant 0 : index
    %c0_5 = arith.constant 0 : index
    %5 = vector.load %arg5[%c0_4, %c0_5] : memref<2x1xf32, #tpu.memory_space<vmem>>, vector<2x1xf32>
    %6 = vector.broadcast %5 : vector<2x1xf32> to vector<2x64xf32>
    %7 = arith.addf %4, %6 : vector<2x64xf32>
    %8 = arith.truncf %7 : vector<2x64xf32> to vector<2x64xbf16>
    %c0_6 = arith.constant 0 : index
    %c0_7 = arith.constant 0 : index
    %c0_8 = arith.constant 0 : index
    %9 = vector.load %arg8[%c0_6, %c0_7, %c0_8] : memref<1x2x64xbf16, #tpu.memory_space<vmem>>, vector<1x2x64xbf16>
    %10 = vector.shape_cast %9 : vector<1x2x64xbf16> to vector<2x64xbf16>
    %11 = vector.shape_cast %8 : vector<2x64xbf16> to vector<1x2x64xbf16>
    tpu.vector_store %arg8[%c0_6, %c0_7, %c0_8], %11 {strides = array<i32>} : memref<1x2x64xbf16, #tpu.memory_space<vmem>>, vector<1x2x64xbf16>,
    %c0_9 = arith.constant 0 : index
    %c0_10 = arith.constant 0 : index
    %c0_11 = arith.constant 0 : index
    %12 = vector.load %arg3[%c0_9, %c0_10, %c0_11] : memref<1x64x16xf32, #tpu.memory_space<vmem>>, vector<1x64x16xf32>
    %13 = vector.shape_cast %12 : vector<1x64x16xf32> to vector<64x16xf32>
    %14 = arith.truncf %13 : vector<64x16xf32> to vector<64x16xbf16>
    %c0_12 = arith.constant 0 : index
    %c0_13 = arith.constant 0 : index
    %15 = vector.load %arg6[%c0_12, %c0_13] : memref<16x16xbf16, #tpu.memory_space<vmem>>, vector<16x16xbf16>
    %cst_14 = arith.constant dense<0.000000e+00> : vector<64x16xf32>
    %16 = tpu.matmul %14, %15, %cst_14 {dimension_numbers = #tpu.dot_dimension_numbers<[1], [0], [0], [1], [0, 0, 1, 1], [], []>} : vector<64x16xbf16>, vector<16x16xbf16>, vector<64x16xf32> -> vector<64x16xf32>
    %c0_15 = arith.constant 0 : index
    %c0_16 = arith.constant 0 : index
    %17 = vector.load %arg7[%c0_15, %c0_16] : memref<1x16xf32, #tpu.memory_space<vmem>>, vector<1x16xf32>
    %18 = vector.broadcast %17 : vector<1x16xf32> to vector<64x16xf32>
    %19 = arith.addf %16, %18 : vector<64x16xf32>
    %20 = arith.truncf %19 : vector<64x16xf32> to vector<64x16xbf16>
    %c0_17 = arith.constant 0 : index
    %c0_18 = arith.constant 0 : index
    %c0_19 = arith.constant 0 : index
    %21 = vector.load %arg9[%c0_17, %c0_18, %c0_19] : memref<1x64x16xbf16, #tpu.memory_space<vmem>>, vector<1x64x16xbf16>
    %22 = vector.shape_cast %21 : vector<1x64x16xbf16> to vector<64x16xbf16>
    %23 = vector.shape_cast %20 : vector<64x16xbf16> to vector<1x64x16xbf16>
    tpu.vector_store %arg9[%c0_17, %c0_18, %c0_19], %23 {strides = array<i32>} : memref<1x64x16xbf16, #tpu.memory_space<vmem>>, vector<1x64x16xbf16>,
    return
  }
  func.func @transform_0(%arg0: i32, %arg1: i32) -> (i32, i32, i32) {
    %c0_i32 = arith.constant 0 : i32
    %c0_i32_0 = arith.constant 0 : i32
    return %arg0, %c0_i32, %arg1 : i32, i32, i32
  }
  func.func @transform_1(%arg0: i32, %arg1: i32) -> (i32, i32, i32) {
    %c0_i32 = arith.constant 0 : i32
    %c0_i32_0 = arith.constant 0 : i32
    return %arg0, %arg1, %c0_i32 : i32, i32, i32
  }
  func.func @transform_2(%arg0: i32, %arg1: i32) -> (i32, i32) {
    %c0_i32 = arith.constant 0 : i32
    %c0_i32_0 = arith.constant 0 : i32
    %c0_i32_1 = arith.constant 0 : i32
    return %c0_i32, %c0_i32_0 : i32, i32
  }
  func.func @transform_3(%arg0: i32, %arg1: i32) -> (i32, i32) {
    %c0_i32 = arith.constant 0 : i32
    %c0_i32_0 = arith.constant 0 : i32
    %c0_i32_1 = arith.constant 0 : i32
    return %c0_i32, %c0_i32_0 : i32, i32
  }
  func.func @transform_4(%arg0: i32, %arg1: i32) -> (i32, i32) {
    %c0_i32 = arith.constant 0 : i32
    %c0_i32_0 = arith.constant 0 : i32
    %c0_i32_1 = arith.constant 0 : i32
    return %c0_i32, %c0_i32_0 : i32, i32
  }
  func.func @transform_5(%arg0: i32, %arg1: i32) -> (i32, i32) {
    %c0_i32 = arith.constant 0 : i32
    %c0_i32_0 = arith.constant 0 : i32
    %c0_i32_1 = arith.constant 0 : i32
    return %c0_i32, %c0_i32_0 : i32, i32
  }
  func.func @transform_6(%arg0: i32, %arg1: i32) -> (i32, i32, i32) {
    %c0_i32 = arith.constant 0 : i32
    %c0_i32_0 = arith.constant 0 : i32
    return %arg0, %c0_i32, %arg1 : i32, i32, i32
  }
  func.func @transform_7(%arg0: i32, %arg1: i32) -> (i32, i32, i32) {
    %c0_i32 = arith.constant 0 : i32
    %c0_i32_0 = arith.constant 0 : i32
    return %arg0, %arg1, %c0_i32 : i32, i32, i32
  }
}

module attributes {stable_mosaic.version = 11 : i64} {
  func.func @_attention_kernel(%arg0: i32, %arg1: i32, %arg2: memref<1x64x16xf32, #tpu.memory_space<vmem>>, %arg3: memref<16x2xbf16, #tpu.memory_space<vmem>>, %arg4: memref<1x2xf32, #tpu.memory_space<vmem>>, %arg5: memref<1x2x64xbf16, #tpu.memory_space<vmem>>, %arg6: memref<1x64x16xbf16, #tpu.memory_space<vmem>>, %arg7: memref<1xf32, #tpu.memory_space<smem>>, %arg8: memref<1x64x16xf32, #tpu.memory_space<vmem>>, %arg9: memref<1x64x64xf32, #tpu.memory_space<vmem>>) attributes {dimension_semantics = [#tpu.dimension_semantics<parallel>, #tpu.dimension_semantics<parallel>], iteration_bounds = array<i64: 2, 1>, scalar_prefetch = 0 : i64, scratch_operands = 0 : i64, tpu.core_type = #tpu.core_type<tc>, window_params = [{transform_indices = @transform_0, window_bounds = array<i64: 1, 64, 16>}, {pipeline_mode = #tpu.pipeline_mode<synchronous>, transform_indices = @transform_1, window_bounds = array<i64: 16, 2>}, {pipeline_mode = #tpu.pipeline_mode<synchronous>, transform_indices = @transform_2, window_bounds = array<i64: 1, 2>}, {transform_indices = @transform_3, window_bounds = array<i64: 1, 2, 64>}, {transform_indices = @transform_4, window_bounds = array<i64: 1, 64, 16>}, {transform_indices = @transform_5, window_bounds = array<i64: 1>}, {transform_indices = @transform_6, window_bounds = array<i64: 1, 64, 16>}, {transform_indices = @transform_7, window_bounds = array<i64: 1, 64, 64>}]} {
    %c0 = arith.constant 0 : index
    %c0_0 = arith.constant 0 : index
    %c0_1 = arith.constant 0 : index
    %0 = vector.load %arg2[%c0, %c0_0, %c0_1] : memref<1x64x16xf32, #tpu.memory_space<vmem>>, vector<1x64x16xf32>
    %1 = vector.shape_cast %0 : vector<1x64x16xf32> to vector<64x16xf32>
    %2 = arith.truncf %1 : vector<64x16xf32> to vector<64x16xbf16>
    %c0_2 = arith.constant 0 : index
    %c0_3 = arith.constant 0 : index
    %3 = vector.load %arg3[%c0_2, %c0_3] : memref<16x2xbf16, #tpu.memory_space<vmem>>, vector<16x2xbf16>
    %cst = arith.constant dense<0.000000e+00> : vector<64x2xf32>
    %4 = tpu.matmul %2, %3, %cst {dimension_numbers = #tpu.dot_dimension_numbers<[1], [0], [0], [1], [0, 0, 1, 1], [], []>} : vector<64x16xbf16>, vector<16x2xbf16>, vector<64x2xf32> -> vector<64x2xf32>
    %c0_4 = arith.constant 0 : index
    %c0_5 = arith.constant 0 : index
    %5 = vector.load %arg4[%c0_4, %c0_5] : memref<1x2xf32, #tpu.memory_space<vmem>>, vector<1x2xf32>
    %6 = vector.broadcast %5 : vector<1x2xf32> to vector<64x2xf32>
    %7 = arith.addf %4, %6 : vector<64x2xf32>
    %8 = arith.truncf %7 : vector<64x2xf32> to vector<64x2xbf16>
    %c0_6 = arith.constant 0 : index
    %c0_7 = arith.constant 0 : index
    %c0_8 = arith.constant 0 : index
    %9 = vector.load %arg5[%c0_6, %c0_7, %c0_8] : memref<1x2x64xbf16, #tpu.memory_space<vmem>>, vector<1x2x64xbf16>
    %10 = vector.shape_cast %9 : vector<1x2x64xbf16> to vector<2x64xbf16>
    %cst_9 = arith.constant dense<0.000000e+00> : vector<64x64xf32>
    %11 = tpu.matmul %8, %10, %cst_9 {dimension_numbers = #tpu.dot_dimension_numbers<[1], [0], [0], [1], [0, 0, 1, 1], [], []>} : vector<64x2xbf16>, vector<2x64xbf16>, vector<64x64xf32> -> vector<64x64xf32>
    %cst_10 = arith.constant dense<0xFF800000> : vector<64xf32>
    %12 = vector.multi_reduction <maximumf>, %11, %cst_10 [1] : vector<64x64xf32> to vector<64xf32>
    %13 = vector.shape_cast %12 : vector<64xf32> to vector<64x1xf32>
    %14 = vector.broadcast %13 : vector<64x1xf32> to vector<64x64xf32>
    %15 = arith.subf %11, %14 : vector<64x64xf32>
    %16 = math.exp %15 : vector<64x64xf32>
    %cst_11 = arith.constant dense<0.000000e+00> : vector<64xf32>
    %17 = vector.multi_reduction <add>, %16, %cst_11 [1] : vector<64x64xf32> to vector<64xf32>
    %18 = vector.shape_cast %17 : vector<64xf32> to vector<64x1xf32>
    %19 = tpu.reciprocal %18 : vector<64x1xf32> -> vector<64x1xf32>
    %20 = vector.broadcast %19 : vector<64x1xf32> to vector<64x64xf32>
    %21 = arith.mulf %16, %20 : vector<64x64xf32>
    %22 = arith.truncf %21 : vector<64x64xf32> to vector<64x64xbf16>
    %c0_12 = arith.constant 0 : index
    %c0_13 = arith.constant 0 : index
    %c0_14 = arith.constant 0 : index
    %23 = vector.load %arg6[%c0_12, %c0_13, %c0_14] : memref<1x64x16xbf16, #tpu.memory_space<vmem>>, vector<1x64x16xbf16>
    %24 = vector.shape_cast %23 : vector<1x64x16xbf16> to vector<64x16xbf16>
    %cst_15 = arith.constant dense<0.000000e+00> : vector<64x16xf32>
    %25 = tpu.matmul %22, %24, %cst_15 {dimension_numbers = #tpu.dot_dimension_numbers<[1], [0], [0], [1], [0, 0, 1, 1], [], []>} : vector<64x64xbf16>, vector<64x16xbf16>, vector<64x16xf32> -> vector<64x16xf32>
    %c0_16 = arith.constant 0 : index
    %26 = memref.load %arg7[%c0_16] : memref<1xf32, #tpu.memory_space<smem>>
    %27 = vector.broadcast %26 : f32 to vector<64x16xf32>
    %28 = arith.mulf %27, %25 : vector<64x16xf32>
    %29 = arith.addf %28, %1 : vector<64x16xf32>
    %c0_17 = arith.constant 0 : index
    %c0_18 = arith.constant 0 : index
    %c0_19 = arith.constant 0 : index
    %30 = vector.load %arg8[%c0_17, %c0_18, %c0_19] : memref<1x64x16xf32, #tpu.memory_space<vmem>>, vector<1x64x16xf32>
    %31 = vector.shape_cast %30 : vector<1x64x16xf32> to vector<64x16xf32>
    %32 = vector.shape_cast %29 : vector<64x16xf32> to vector<1x64x16xf32>
    tpu.vector_store %arg8[%c0_17, %c0_18, %c0_19], %32 {strides = array<i32>} : memref<1x64x16xf32, #tpu.memory_space<vmem>>, vector<1x64x16xf32>,
    %c0_20 = arith.constant 0 : index
    %c0_21 = arith.constant 0 : index
    %c0_22 = arith.constant 0 : index
    %33 = vector.load %arg9[%c0_20, %c0_21, %c0_22] : memref<1x64x64xf32, #tpu.memory_space<vmem>>, vector<1x64x64xf32>
    %34 = vector.shape_cast %33 : vector<1x64x64xf32> to vector<64x64xf32>
    %35 = vector.shape_cast %21 : vector<64x64xf32> to vector<1x64x64xf32>
    tpu.vector_store %arg9[%c0_20, %c0_21, %c0_22], %35 {strides = array<i32>} : memref<1x64x64xf32, #tpu.memory_space<vmem>>, vector<1x64x64xf32>,
    return
  }
  func.func @transform_0(%arg0: i32, %arg1: i32) -> (i32, i32, i32) {
    %c0_i32 = arith.constant 0 : i32
    %c0_i32_0 = arith.constant 0 : i32
    return %arg0, %arg1, %c0_i32 : i32, i32, i32
  }
  func.func @transform_1(%arg0: i32, %arg1: i32) -> (i32, i32) {
    %c0_i32 = arith.constant 0 : i32
    %c0_i32_0 = arith.constant 0 : i32
    %c0_i32_1 = arith.constant 0 : i32
    return %c0_i32, %c0_i32_0 : i32, i32
  }
  func.func @transform_2(%arg0: i32, %arg1: i32) -> (i32, i32) {
    %c0_i32 = arith.constant 0 : i32
    %c0_i32_0 = arith.constant 0 : i32
    %c0_i32_1 = arith.constant 0 : i32
    return %c0_i32, %c0_i32_0 : i32, i32
  }
  func.func @transform_3(%arg0: i32, %arg1: i32) -> (i32, i32, i32) {
    %c0_i32 = arith.constant 0 : i32
    %c0_i32_0 = arith.constant 0 : i32
    %c0_i32_1 = arith.constant 0 : i32
    return %arg0, %c0_i32, %c0_i32_0 : i32, i32, i32
  }
  func.func @transform_4(%arg0: i32, %arg1: i32) -> (i32, i32, i32) {
    %c0_i32 = arith.constant 0 : i32
    %c0_i32_0 = arith.constant 0 : i32
    %c0_i32_1 = arith.constant 0 : i32
    return %arg0, %c0_i32, %c0_i32_0 : i32, i32, i32
  }
  func.func @transform_5(%arg0: i32, %arg1: i32) -> i32 {
    %c0_i32 = arith.constant 0 : i32
    %c0_i32_0 = arith.constant 0 : i32
    return %c0_i32 : i32
  }
  func.func @transform_6(%arg0: i32, %arg1: i32) -> (i32, i32, i32) {
    %c0_i32 = arith.constant 0 : i32
    %c0_i32_0 = arith.constant 0 : i32
    return %arg0, %arg1, %c0_i32 : i32, i32, i32
  }
  func.func @transform_7(%arg0: i32, %arg1: i32) -> (i32, i32, i32) {
    %c0_i32 = arith.constant 0 : i32
    %c0_i32_0 = arith.constant 0 : i32
    return %arg0, %arg1, %c0_i32 : i32, i32, i32
  }
}

</mosaic_0001>

<llo_original>
// kernel: self_attention_pallas.2
$region0: #{self_attention_pallas.2}
  #allocation0 [shape = 'u32[]', space=smem, size = 0x4, offset = 0x4, fixed_abs, tag = 'smem constant byte address 0x4 - core index']
  #allocation1 [shape = 'u32[72,128]{1,0:T(1,128)}', space=vmem, size = 0x9000, scoped, tag = 'internal scratch']
  %s0 = inlined_call_operand.vmem [shape: f32[2,16,64], index: 0, kind: input, shape index: {}]
  %s1 = inlined_call_operand.vmem [shape: f32[2,64,16], index: 1, kind: input, shape index: {}]
  %s2 = inlined_call_operand.vmem [shape: bf16[2,16], index: 2, kind: input, shape index: {}]
  %s3 = inlined_call_operand.vmem [shape: f32[2,1], index: 3, kind: input, shape index: {}]
  %s4 = inlined_call_operand.vmem [shape: bf16[16,16], index: 4, kind: input, shape index: {}]
  %s5 = inlined_call_operand.vmem [shape: f32[1,16], index: 5, kind: input, shape index: {}]
  %s6 = inlined_call_operand.vmem [shape: bf16[2,2,64], index: 6, kind: output, shape index: {0}]
  %s7 = inlined_call_operand.vmem [shape: bf16[2,64,16], index: 7, kind: output, shape index: {1}]
  %8 = xla_tuple %s6, %s7
  %s9 = sld [smem:[#allocation0]]
  $region65: #{self_attention_pallas.2} parent=0
    _
  %s11 = ssub.s32 1, %s9
  %s12 = scalar_select 0, %s11, %s9
  loop: start=0, step=1, limit=4
  $region2: #{self_attention_pallas.2} parent=0 // loop_pre_header
    _
  $region3: #{self_attention_pallas.2} parent=0 // loop_header
    %s14 = sphi 0, %s18
    %p15 = scmp.ge.s32.totalorder %s14, 4
    %s21 = sphi 0, %s33
    %s22 = sphi 0, %s29
    %s23 = sphi 0, %s21
    %s24 = sphi 0, %s22
    %s25 = sphi 0, %s23
    %s26 = sphi 0, %s24
    %s38 = sphi 0, %s40
    %s41 = sphi 0, %s38
    %s42 = sphi 0, %s41
    %s58 = sphi 0, %s42
    %s66 = sphi 0, %s68
    %s69 = sphi 0, %s66
    %s70 = sphi 0, %s69
    %s86 = sphi 0, %s70
    %s90 = sphi 0, %s90
    %s92 = sphi 0, %s90
    %s93 = sphi 0, %s92
    %s107 = sphi 0, %s93
    %s111 = sphi 0, %s111
    %s113 = sphi 0, %s111
    %s114 = sphi 0, %s113
    %s128 = sphi 0, %s114
    %s132 = sphi 0, %s132
    %s134 = sphi 0, %s132
    %s135 = sphi 0, %s134
    %s149 = sphi 0, %s135
    %s153 = sphi 0, %s153
    %s155 = sphi 0, %s153
    %s156 = sphi 0, %s155
    %s170 = sphi 0, %s156
    %s178 = sphi 0, %s180
    %s181 = sphi 0, %s178
    %s182 = sphi 0, %s181
    %s198 = sphi 0, %s182
    %s206 = sphi 0, %s208
    %s209 = sphi 0, %s206
    %s210 = sphi 0, %s209
    %s226 = sphi 0, %s210
  $region4: #{self_attention_pallas.2} parent=0 // loop_header_branch
    %17 = sbr.rel (%p15) target = $region8
  $region5: #{self_attention_pallas.2} parent=0 // loop_body
    %s19 = ssub.s32 %s14, 1
    %s20 = ssub.s32 %s14, 2
    %s27 = sadd.s32 1, %s22
    %p28 = scmp.ge.s32.totalorder %s27, 1
    %s29 = scalar_select %p28, 0, %s27
    %s30 = sadd.s32 1, %s21
    %s31 = scalar_select %p28, %s30, %s21
    %p32 = scmp.ge.s32.totalorder %s31, 2
    %s33 = scalar_select %p32, 0, %s31
    %s34 = ssub.s32 %s21, %s33
    %s35 = ssub.s32 %s22, %s29
    %s36 = sor.u32 %s34, %s35
    %p37 = scmp.eq.s32.totalorder %s36, 0
    %s39 = sadd.s32 %s38, 1
    %s40 = scalar_select %p37, %s38, %s39
    %p43 = pneg %p37
    %p44 = scmp.eq.s32.totalorder %s14, 1
    %p45 = por %p43, %p44
    %p46 = scmp.ne.s32.totalorder %s38, %s41
    %p47 = scmp.eq.s32.totalorder %s14, 0
    %p48 = por %p46, %p47
    %p49 = scmp.ne.s32.totalorder %s38, %s41
    %p50 = scmp.eq.s32.totalorder %s19, 1
    %p51 = por %p49, %p50
    %p52 = scmp.ne.s32.totalorder %s41, %s42
    %p53 = scmp.eq.s32.totalorder %s19, 0
    %p54 = por %p52, %p53
    %p55 = scmp.ne.s32.totalorder %s41, %s42
    %p56 = scmp.eq.s32.totalorder %s20, 1
    %p57 = por %p55, %p56
    %p59 = scmp.ne.s32.totalorder %s42, %s58
    %p60 = scmp.eq.s32.totalorder %s20, 0
    %p61 = por %p59, %p60
    %s62 = ssub.s32 %s21, %s33
    %s63 = ssub.s32 %s22, %s29
    %s64 = sor.u32 %s62, %s63
    %p65 = scmp.eq.s32.totalorder %s64, 0
    %s67 = sadd.s32 %s66, 1
    %s68 = scalar_select %p65, %s66, %s67
    %p71 = pneg %p65
    %p72 = scmp.eq.s32.totalorder %s14, 1
    %p73 = por %p71, %p72
    %p74 = scmp.ne.s32.totalorder %s66, %s69
    %p75 = scmp.eq.s32.totalorder %s14, 0
    %p76 = por %p74, %p75
    %p77 = scmp.ne.s32.totalorder %s66, %s69
    %p78 = scmp.eq.s32.totalorder %s19, 1
    %p79 = por %p77, %p78
    %p80 = scmp.ne.s32.totalorder %s69, %s70
    %p81 = scmp.eq.s32.totalorder %s19, 0
    %p82 = por %p80, %p81
    %p83 = scmp.ne.s32.totalorder %s69, %s70
    %p84 = scmp.eq.s32.totalorder %s20, 1
    %p85 = por %p83, %p84
    %p87 = scmp.ne.s32.totalorder %s70, %s86
    %p88 = scmp.eq.s32.totalorder %s20, 0
    %p89 = por %p87, %p88
    %s91 = sadd.s32 %s90, 1
    %p94 = scmp.eq.s32.totalorder %s14, 1
    %p95 = scmp.ne.s32.totalorder %s90, %s92
    %p96 = scmp.eq.s32.totalorder %s14, 0
    %p97 = por %p95, %p96
    %p98 = scmp.ne.s32.totalorder %s90, %s92
    %p99 = scmp.eq.s32.totalorder %s19, 1
    %p100 = por %p98, %p99
    %p101 = scmp.ne.s32.totalorder %s92, %s93
    %p102 = scmp.eq.s32.totalorder %s19, 0
    %p103 = por %p101, %p102
    %p104 = scmp.ne.s32.totalorder %s92, %s93
    %p105 = scmp.eq.s32.totalorder %s20, 1
    %p106 = por %p104, %p105
    %p108 = scmp.ne.s32.totalorder %s93, %s107
    %p109 = scmp.eq.s32.totalorder %s20, 0
    %p110 = por %p108, %p109
    %s112 = sadd.s32 %s111, 1
    %p115 = scmp.eq.s32.totalorder %s14, 1
    %p116 = scmp.ne.s32.totalorder %s111, %s113
    %p117 = scmp.eq.s32.totalorder %s14, 0
    %p118 = por %p116, %p117
    %p119 = scmp.ne.s32.totalorder %s111, %s113
    %p120 = scmp.eq.s32.totalorder %s19, 1
    %p121 = por %p119, %p120
    %p122 = scmp.ne.s32.totalorder %s113, %s114
    %p123 = scmp.eq.s32.totalorder %s19, 0
    %p124 = por %p122, %p123
    %p125 = scmp.ne.s32.totalorder %s113, %s114
    %p126 = scmp.eq.s32.totalorder %s20, 1
    %p127 = por %p125, %p126
    %p129 = scmp.ne.s32.totalorder %s114, %s128
    %p130 = scmp.eq.s32.totalorder %s20, 0
    %p131 = por %p129, %p130
    %s133 = sadd.s32 %s132, 1
    %p136 = scmp.eq.s32.totalorder %s14, 1
    %p137 = scmp.ne.s32.totalorder %s132, %s134
    %p138 = scmp.eq.s32.totalorder %s14, 0
    %p139 = por %p137, %p138
    %p140 = scmp.ne.s32.totalorder %s132, %s134
    %p141 = scmp.eq.s32.totalorder %s19, 1
    %p142 = por %p140, %p141
    %p143 = scmp.ne.s32.totalorder %s134, %s135
    %p144 = scmp.eq.s32.totalorder %s19, 0
    %p145 = por %p143, %p144
    %p146 = scmp.ne.s32.totalorder %s134, %s135
    %p147 = scmp.eq.s32.totalorder %s20, 1
    %p148 = por %p146, %p147
    %p150 = scmp.ne.s32.totalorder %s135, %s149
    %p151 = scmp.eq.s32.totalorder %s20, 0
    %p152 = por %p150, %p151
    %s154 = sadd.s32 %s153, 1
    %p157 = scmp.eq.s32.totalorder %s14, 1
    %p158 = scmp.ne.s32.totalorder %s153, %s155
    %p159 = scmp.eq.s32.totalorder %s14, 0
    %p160 = por %p158, %p159
    %p161 = scmp.ne.s32.totalorder %s153, %s155
    %p162 = scmp.eq.s32.totalorder %s19, 1
    %p163 = por %p161, %p162
    %p164 = scmp.ne.s32.totalorder %s155, %s156
    %p165 = scmp.eq.s32.totalorder %s19, 0
    %p166 = por %p164, %p165
    %p167 = scmp.ne.s32.totalorder %s155, %s156
    %p168 = scmp.eq.s32.totalorder %s20, 1
    %p169 = por %p167, %p168
    %p171 = scmp.ne.s32.totalorder %s156, %s170
    %p172 = scmp.eq.s32.totalorder %s20, 0
    %p173 = por %p171, %p172
    %s174 = ssub.s32 %s21, %s33
    %s175 = ssub.s32 %s22, %s29
    %s176 = sor.u32 %s174, %s175
    %p177 = scmp.eq.s32.totalorder %s176, 0
    %s179 = sadd.s32 %s178, 1
    %s180 = scalar_select %p177, %s178, %s179
    %p183 = pneg %p177
    %p184 = scmp.eq.s32.totalorder %s14, 1
    %p185 = por %p183, %p184
    %p186 = scmp.ne.s32.totalorder %s178, %s181
    %p187 = scmp.eq.s32.totalorder %s14, 0
    %p188 = por %p186, %p187
    %p189 = scmp.ne.s32.totalorder %s178, %s181
    %p190 = scmp.eq.s32.totalorder %s19, 1
    %p191 = por %p189, %p190
    %p192 = scmp.ne.s32.totalorder %s181, %s182
    %p193 = scmp.eq.s32.totalorder %s19, 0
    %p194 = por %p192, %p193
    %p195 = scmp.ne.s32.totalorder %s181, %s182
    %p196 = scmp.eq.s32.totalorder %s20, 1
    %p197 = por %p195, %p196
    %p199 = scmp.ne.s32.totalorder %s182, %s198
    %p200 = scmp.eq.s32.totalorder %s20, 0
    %p201 = por %p199, %p200
    %s202 = ssub.s32 %s21, %s33
    %s203 = ssub.s32 %s22, %s29
    %s204 = sor.u32 %s202, %s203
    %p205 = scmp.eq.s32.totalorder %s204, 0
    %s207 = sadd.s32 %s206, 1
    %s208 = scalar_select %p205, %s206, %s207
    %p211 = pneg %p205
    %p212 = scmp.eq.s32.totalorder %s14, 1
    %p213 = por %p211, %p212
    %p214 = scmp.ne.s32.totalorder %s206, %s209
    %p215 = scmp.eq.s32.totalorder %s14, 0
    %p216 = por %p214, %p215
    %p217 = scmp.ne.s32.totalorder %s206, %s209
    %p218 = scmp.eq.s32.totalorder %s19, 1
    %p219 = por %p217, %p218
    %p220 = scmp.ne.s32.totalorder %s209, %s210
    %p221 = scmp.eq.s32.totalorder %s19, 0
    %p222 = por %p220, %p221
    %p223 = scmp.ne.s32.totalorder %s209, %s210
    %p224 = scmp.eq.s32.totalorder %s20, 1
    %p225 = por %p223, %p224
    %p227 = scmp.ne.s32.totalorder %s210, %s226
    %p228 = scmp.eq.s32.totalorder %s20, 0
    %p229 = por %p227, %p228
    %p230 = scmp.le.s32.totalorder 1, %s14
    %p231 = scmp.lt.s32.totalorder %s14, 3
    %p232 = pnand %p230, %p231
    %p233 = pneg %p232
    // Predicated region
    $region9: #{self_attention_pallas.2} parent=5 // pred_check
      _
    $region10: #{self_attention_pallas.2} parent=5 // pred_check_branch
      %235 = sbr.rel (%p232) target = $region12
    $region11: #{self_attention_pallas.2} parent=5 // pred_region
      %s236 = ssub.s32 %s14, 1
      // Predicated region
      $region13: #{self_attention_pallas.2} parent=11 // pred_check
        %p237 = pneg %p103
      $region14: #{self_attention_pallas.2} parent=11 // pred_check_branch
        %239 = sbr.rel (%p237) target = $region16
      $region15: #{self_attention_pallas.2} parent=11 // pred_region
        _
      $region16: #{self_attention_pallas.2} parent=11 // pred_fallthru
        _
      // Predicated region
      $region17: #{self_attention_pallas.2} parent=11 // pred_check
        %p240 = pneg %p124
      $region18: #{self_attention_pallas.2} parent=11 // pred_check_branch
        %242 = sbr.rel (%p240) target = $region20
      $region19: #{self_attention_pallas.2} parent=11 // pred_region
        _
      $region20: #{self_attention_pallas.2} parent=11 // pred_fallthru
        _
      // Predicated region
      $region21: #{self_attention_pallas.2} parent=11 // pred_check
        %p243 = pneg %p145
      $region22: #{self_attention_pallas.2} parent=11 // pred_check_branch
        %245 = sbr.rel (%p243) target = $region24
      $region23: #{self_attention_pallas.2} parent=11 // pred_region
        _
      $region24: #{self_attention_pallas.2} parent=11 // pred_fallthru
        _
      // Predicated region
      $region25: #{self_attention_pallas.2} parent=11 // pred_check
        %p246 = pneg %p166
      $region26: #{self_attention_pallas.2} parent=11 // pred_check_branch
        %248 = sbr.rel (%p246) target = $region28
      $region27: #{self_attention_pallas.2} parent=11 // pred_region
        _
      $region28: #{self_attention_pallas.2} parent=11 // pred_fallthru
        _
    $region12: #{self_attention_pallas.2} parent=5 // pred_fallthru
      _
    %p249 = scmp.lt.s32.totalorder %s14, 2
    // Predicated region
    $region29: #{self_attention_pallas.2} parent=5 // pred_check
      %p250 = pneg %p249
    $region30: #{self_attention_pallas.2} parent=5 // pred_check_branch
      %252 = sbr.rel (%p250) target = $region32
    $region31: #{self_attention_pallas.2} parent=5 // pred_region
      // Predicated region
      $region33: #{self_attention_pallas.2} parent=31 // pred_check
        %p253 = pneg %p48
      $region34: #{self_attention_pallas.2} parent=31 // pred_check_branch
        %255 = sbr.rel (%p253) target = $region36
      $region35: #{self_attention_pallas.2} parent=31 // pred_region
        %p256 = scmp.lt.s32.totalorder %s21, 1
        %s257 = scalar_select %p256, %s21, 1
        %p258 = scmp.lt.s32.totalorder %s22, 0
        %s259 = scalar_select %p258, %s22, 0
        %s260 = smul.addr %s257, 2
        %s261 = sadd.s32 %s259, %s260
        %s262 = smul.addr %s261, 8
        %s263 = scalar_lea.vmem %s0, %s262
      $region36: #{self_attention_pallas.2} parent=31 // pred_fallthru
        _
      // Predicated region
      $region37: #{self_attention_pallas.2} parent=31 // pred_check
        %p264 = pneg %p76
      $region38: #{self_attention_pallas.2} parent=31 // pred_check_branch
        %266 = sbr.rel (%p264) target = $region40
      $region39: #{self_attention_pallas.2} parent=31 // pred_region
        %s267 = smul.u32 8, %s22
        %p268 = scmp.lt.s32.totalorder %s21, 1
        %s269 = scalar_select %p268, %s21, 1
        %p270 = scmp.lt.s32.totalorder %s267, 7
        %s271 = scalar_select %p270, %s267, 7
        %s272 = smul.addr %s269, 8
        %s273 = sadd.s32 %s271, %s272
        %s274 = smul.addr %s273, 8
        %s275 = scalar_lea.vmem %s1, %s274
        %s276 = smul.u32 8, %s22
      $region40: #{self_attention_pallas.2} parent=31 // pred_fallthru
        _
    $region32: #{self_attention_pallas.2} parent=5 // pred_fallthru
      _
    %p277 = scmp.le.s32.totalorder 1, %s14
    %p278 = scmp.lt.s32.totalorder %s14, 3
    %p279 = pnand %p277, %p278
    %p280 = pneg %p279
    // Predicated region
    $region41: #{self_attention_pallas.2} parent=5 // pred_check
      _
    $region42: #{self_attention_pallas.2} parent=5 // pred_check_branch
      %282 = sbr.rel (%p279) target = $region44
    $region43: #{self_attention_pallas.2} parent=5 // pred_region
      %s283 = ssub.s32 %s14, 1
      %p284 = scmp.lt.s32.totalorder %s23, 1
      %s285 = scalar_select %p284, %s23, 1
      %p286 = scmp.lt.s32.totalorder %s24, 0
      %s287 = scalar_select %p286, %s24, 0
      %s288 = smul.addr %s285, 2
      %s289 = sadd.s32 %s287, %s288
      %s290 = smul.addr %s289, 8
      %s291 = scalar_lea.vmem %s0, %s290
      %p292 = pneg %p54
      %p293 = pneg %p51
      %s294 = smul.u32 8, %s24
      %p295 = scmp.lt.s32.totalorder %s23, 1
      %s296 = scalar_select %p295, %s23, 1
      %p297 = scmp.lt.s32.totalorder %s294, 7
      %s298 = scalar_select %p297, %s294, 7
      %s299 = smul.addr %s296, 8
      %s300 = sadd.s32 %s298, %s299
      %s301 = smul.addr %s300, 8
      %s302 = scalar_lea.vmem %s1, %s301
      %p303 = pneg %p82
      %p304 = pneg %p79
      %p305 = pneg %p103
      %p306 = pneg %p100
      %p307 = pneg %p124
      %p308 = pneg %p121
      %p309 = pneg %p145
      %p310 = pneg %p142
      %p311 = pneg %p166
      %p312 = pneg %p163
      %p313 = pneg %p194
      %p314 = pneg %p191
      %p315 = scmp.lt.s32.totalorder %s23, 1
      %s316 = scalar_select %p315, %s23, 1
      %p317 = scmp.lt.s32.totalorder %s24, 0
      %s318 = scalar_select %p317, %s24, 0
      %s319 = sadd.s32 %s318, %s316
      %s320 = scalar_lea.vmem %s6, %s319
      %p321 = pneg %p222
      %p322 = pneg %p219
      %s323 = smul.u32 8, %s24
      %p324 = scmp.lt.s32.totalorder %s23, 1
      %s325 = scalar_select %p324, %s23, 1
      %p326 = scmp.lt.s32.totalorder %s323, 7
      %s327 = scalar_select %p326, %s323, 7
      %s328 = smul.addr %s325, 8
      %s329 = sadd.s32 %s327, %s328
      %s330 = smul.addr %s329, 4
      %s331 = scalar_lea.vmem %s7, %s330
      %p332 = scmp.lt.s32.totalorder %s23, 1
      %s333 = scalar_select %p332, %s23, 1
      %p334 = scmp.lt.s32.totalorder %s24, 0
      %s335 = scalar_select %p334, %s24, 0
      %s336 = smul.addr %s333, 2
      %s337 = sadd.s32 %s335, %s336
      %s338 = smul.addr %s337, 8
      %s339 = scalar_lea.vmem %s0, %s338
      %s340 = smul.u32 8, %s24
      %p341 = scmp.lt.s32.totalorder %s23, 1
      %s342 = scalar_select %p341, %s23, 1
      %p343 = scmp.lt.s32.totalorder %s340, 7
      %s344 = scalar_select %p343, %s340, 7
      %s345 = smul.addr %s342, 8
      %s346 = sadd.s32 %s344, %s345
      %s347 = smul.addr %s346, 8
      %s348 = scalar_lea.vmem %s1, %s347
      %s349 = smul.u32 8, %s24
      %p350 = scmp.lt.s32.totalorder %s23, 1
      %s351 = scalar_select %p350, %s23, 1
      %p352 = scmp.lt.s32.totalorder %s24, 0
      %s353 = scalar_select %p352, %s24, 0
      %s354 = sadd.s32 %s353, %s351
      %s355 = scalar_lea.vmem %s6, %s354
      %s356 = smul.u32 8, %s24
      %p357 = scmp.lt.s32.totalorder %s23, 1
      %s358 = scalar_select %p357, %s23, 1
      %p359 = scmp.lt.s32.totalorder %s356, 7
      %s360 = scalar_select %p359, %s356, 7
      %s361 = smul.addr %s358, 8
      %s362 = sadd.s32 %s360, %s361
      %s363 = smul.addr %s362, 4
      %s364 = scalar_lea.vmem %s7, %s363
      %s365 = smul.u32 8, %s24
      %v367 = vld [vmem:[%s2] sm:$0x1]
      %v368 = vld [vmem:[%s339] sm:$0xff]
      %v369 = vld [vmem:[%s339 + $0x8] sm:$0xff]
      %v370 = vpack.c.bf16 %v369, %v368
      %v371 = vld [vmem:[%s3] sm:$0x3]
      %373 = vset.pattern.permute.xlu0 0
      %374 = vperm.xlu0 %373, %v371
      %v375 = vpop.permute.xlu0 %374
      %vm377 = vcmask 130048
      %v379 = vsel %vm377, %v367, 0
      %381 = vmatpush.bf16.msra.mxu0 0
      %382 = vmatpush.bf16.msra.mxu0 0
      %383 = vmatpush.bf16.msra.mxu0 0
      %384 = vmatpush.bf16.msra.mxu0 0
      %385 = vmatpush.bf16.msra.mxu0 0
      %386 = vmatpush.bf16.msra.mxu0 0
      %387 = vmatpush.bf16.msra.mxu0 0
      %388 = vmatpush.bf16.msra.mxu0 %v370
      %389 = vmatmul.bf16.gmra.mxu0 %v379
      %v390 = vpop.f32.mrf.mxu0
      %v391 = vadd.f32 %v375, %v390
      %v392 = vpop.f32.mrf.mxu0
      %393 = vdwg.mxu0
      %v394 = vpack.c.bf16 %v391, %v391
      %vm395 = vcmask 516096
      %396 = vst.msk [vmem:[%s355] sm:$0x1] %vm395, %v394
      %v397 = vld [vmem:[%s348] sm:$0xff]
      %v398 = vld [vmem:[%s348 + $0x8] sm:$0xff]
      %v399 = vld [vmem:[%s348 + $0x10] sm:$0xff]
      %v400 = vld [vmem:[%s348 + $0x18] sm:$0xff]
      %v401 = vld [vmem:[%s348 + $0x20] sm:$0xff]
      %v402 = vld [vmem:[%s348 + $0x28] sm:$0xff]
      %v403 = vld [vmem:[%s348 + $0x30] sm:$0xff]
      %v404 = vld [vmem:[%s348 + $0x38] sm:$0xff]
      %v405 = vpack.c.bf16 %v398, %v397
      %v406 = vpack.c.bf16 %v400, %v399
      %v407 = vpack.c.bf16 %v402, %v401
      %v408 = vpack.c.bf16 %v404, %v403
      %v409 = vld [vmem:[%s4] sm:$0xf]
      %v410 = vld [vmem:[%s4 + $0x4] sm:$0xf]
      %v411 = vld [vmem:[%s5] sm:$0x1]
      %v413 = vperm.slane %v411, 0
      %v417 = vunpack.c.l.b16 %v409
      %v418 = vunpack.c.l.b16 %v410
      %v419 = vpack.c.b16 %v418, %v417
      %v422 = vsel %vm377, %v405, 0
      %v425 = vsel %vm377, %v406, 0
      %v428 = vsel %vm377, %v407, 0
      %v431 = vsel %vm377, %v408, 0
      %433 = vmatpush.bf16.msra.mxu0 0
      %434 = vmatpush.bf16.msra.mxu0 0
      %435 = vmatpush.bf16.msra.mxu0 0
      %436 = vmatpush.bf16.msra.mxu0 0
      %437 = vmatpush.bf16.msra.mxu0 0
      %438 = vmatpush.bf16.msra.mxu0 0
      %439 = vmatpush.bf16.msra.mxu0 0
      %440 = vmatpush.bf16.msra.mxu0 %v419
      %441 = vmatmul.bf16.gmra.mxu0 %v422
      %v442 = vpop.f32.mrf.mxu0
      %v443 = vadd.f32 %v413, %v442
      %v444 = vpop.f32.mrf.mxu0
      %v445 = vadd.f32 %v413, %v444
      %446 = vmatmul.bf16.gmra.mxu0 %v425
      %v447 = vpop.f32.mrf.mxu0
      %v448 = vadd.f32 %v413, %v447
      %v449 = vpop.f32.mrf.mxu0
      %v450 = vadd.f32 %v413, %v449
      %451 = vmatmul.bf16.gmra.mxu0 %v428
      %v452 = vpop.f32.mrf.mxu0
      %v453 = vadd.f32 %v413, %v452
      %v454 = vpop.f32.mrf.mxu0
      %v455 = vadd.f32 %v413, %v454
      %456 = vmatmul.bf16.gmra.mxu0 %v431
      %v457 = vpop.f32.mrf.mxu0
      %v458 = vadd.f32 %v413, %v457
      %v459 = vpop.f32.mrf.mxu0
      %v460 = vadd.f32 %v413, %v459
      %461 = vdwg.mxu0
      %v462 = vpack.c.bf16 %v443, %v443
      %v463 = vpack.c.bf16 %v445, %v445
      %v464 = vpack.c.bf16 %v448, %v448
      %v465 = vpack.c.bf16 %v450, %v450
      %v466 = vpack.c.bf16 %v453, %v453
      %v467 = vpack.c.bf16 %v455, %v455
      %v468 = vpack.c.bf16 %v458, %v458
      %v469 = vpack.c.bf16 %v460, %v460
      %vm470 = vcmask 125952
      %471 = vst.msk [vmem:[%s364] sm:$0xf] %vm470, %v462
      %472 = vst.msk [vmem:[%s364 + $0x4] sm:$0xf] %vm470, %v463
      %473 = vst.msk [vmem:[%s364 + $0x8] sm:$0xf] %vm470, %v464
      %474 = vst.msk [vmem:[%s364 + $0xc] sm:$0xf] %vm470, %v465
      %475 = vst.msk [vmem:[%s364 + $0x10] sm:$0xf] %vm470, %v466
      %476 = vst.msk [vmem:[%s364 + $0x14] sm:$0xf] %vm470, %v467
      %477 = vst.msk [vmem:[%s364 + $0x18] sm:$0xf] %vm470, %v468
      %478 = vst.msk [vmem:[%s364 + $0x1c] sm:$0xf] %vm470, %v469
      %p479 = scmp.lt.s32.totalorder %s23, 1
      %s480 = scalar_select %p479, %s23, 1
      %p481 = scmp.lt.s32.totalorder %s24, 0
      %s482 = scalar_select %p481, %s24, 0
      %s483 = sadd.s32 %s482, %s480
      %s484 = scalar_lea.vmem %s6, %s483
      %s485 = smul.u32 8, %s24
      %p486 = scmp.lt.s32.totalorder %s23, 1
      %s487 = scalar_select %p486, %s23, 1
      %p488 = scmp.lt.s32.totalorder %s485, 7
      %s489 = scalar_select %p488, %s485, 7
      %s490 = smul.addr %s487, 8
      %s491 = sadd.s32 %s489, %s490
      %s492 = smul.addr %s491, 4
      %s493 = scalar_lea.vmem %s7, %s492
      // Predicated region
      $region45: #{self_attention_pallas.2} parent=43 // pred_check
        %p494 = pneg %p191
      $region46: #{self_attention_pallas.2} parent=43 // pred_check_branch
        %496 = sbr.rel (%p494) target = $region48
      $region47: #{self_attention_pallas.2} parent=43 // pred_region
        _
      $region48: #{self_attention_pallas.2} parent=43 // pred_fallthru
        _
      // Predicated region
      $region49: #{self_attention_pallas.2} parent=43 // pred_check
        %p497 = pneg %p219
      $region50: #{self_attention_pallas.2} parent=43 // pred_check_branch
        %499 = sbr.rel (%p497) target = $region52
      $region51: #{self_attention_pallas.2} parent=43 // pred_region
        %s500 = smul.u32 8, %s24
      $region52: #{self_attention_pallas.2} parent=43 // pred_fallthru
        _
    $region44: #{self_attention_pallas.2} parent=5 // pred_fallthru
      _
    %p501 = scmp.le.s32.totalorder 2, %s14
    // Predicated region
    $region53: #{self_attention_pallas.2} parent=5 // pred_check
      %p502 = pneg %p501
    $region54: #{self_attention_pallas.2} parent=5 // pred_check_branch
      %504 = sbr.rel (%p502) target = $region56
    $region55: #{self_attention_pallas.2} parent=5 // pred_region
      %s505 = ssub.s32 %s14, 2
      // Predicated region
      $region57: #{self_attention_pallas.2} parent=55 // pred_check
        %p506 = pneg %p197
      $region58: #{self_attention_pallas.2} parent=55 // pred_check_branch
        %508 = sbr.rel (%p506) target = $region60
      $region59: #{self_attention_pallas.2} parent=55 // pred_region
        %p509 = scmp.lt.s32.totalorder %s25, 1
        %s510 = scalar_select %p509, %s25, 1
        %p511 = scmp.lt.s32.totalorder %s26, 0
        %s512 = scalar_select %p511, %s26, 0
        %s513 = sadd.s32 %s512, %s510
        %s514 = scalar_lea.vmem %s6, %s513
      $region60: #{self_attention_pallas.2} parent=55 // pred_fallthru
        _
      // Predicated region
      $region61: #{self_attention_pallas.2} parent=55 // pred_check
        %p515 = pneg %p225
      $region62: #{self_attention_pallas.2} parent=55 // pred_check_branch
        %517 = sbr.rel (%p515) target = $region64
      $region63: #{self_attention_pallas.2} parent=55 // pred_region
        %s518 = smul.u32 8, %s26
        %p519 = scmp.lt.s32.totalorder %s25, 1
        %s520 = scalar_select %p519, %s25, 1
        %p521 = scmp.lt.s32.totalorder %s518, 7
        %s522 = scalar_select %p521, %s518, 7
        %s523 = smul.addr %s520, 8
        %s524 = sadd.s32 %s522, %s523
        %s525 = smul.addr %s524, 4
        %s526 = scalar_lea.vmem %s7, %s525
      $region64: #{self_attention_pallas.2} parent=55 // pred_fallthru
        _
    $region56: #{self_attention_pallas.2} parent=5 // pred_fallthru
      _
  $region6: #{self_attention_pallas.2} parent=0 // loop_footer
    %s18 = sadd.s32 1, %s14
  $region7: #{self_attention_pallas.2} parent=0 // loop_footer_branch
    %13 = sbr.rel target = $region3
  $region8: #{self_attention_pallas.2} parent=0 // loop_exit
    _

// kernel: self_attention_pallas.3
$region0: #{self_attention_pallas.3}
  #allocation0 [shape = 'u32[]', space=smem, size = 0x4, offset = 0x4, fixed_abs, tag = 'smem constant byte address 0x4 - core index']
  #allocation1 [shape = 'u32[72,128]{1,0:T(1,128)}', space=vmem, size = 0x9000, scoped, tag = 'internal scratch']
  #allocation2 [shape = 'f32[1]{0:T(128)S(6)}', space=smem, size = 0x200, scoped, tag = 'scoped memory for self_attention_pallas.3']
  %s0 = inlined_call_operand.vmem [shape: f32[2,64,16], index: 0, kind: input, shape index: {}]
  %s1 = inlined_call_operand.vmem [shape: bf16[16,2], index: 1, kind: input, shape index: {}]
  %s2 = inlined_call_operand.vmem [shape: f32[1,2], index: 2, kind: input, shape index: {}]
  %s3 = inlined_call_operand.vmem [shape: bf16[2,2,64], index: 3, kind: input, shape index: {}]
  %s4 = inlined_call_operand.vmem [shape: bf16[2,64,16], index: 4, kind: input, shape index: {}]
  %s5 = inlined_call_operand.<no memory space> [shape: f32[1], index: 5, kind: input, shape index: {}]
  %s6 = inlined_call_operand.hbm [shape: f32[2,64,16], index: 6, kind: output, shape index: {0}]
  %s7 = inlined_call_operand.hbm [shape: f32[2,64,64], index: 7, kind: output, shape index: {1}]
  %8 = xla_tuple %s6, %s7
  %s9 = sld [smem:[#allocation0]]
  $region65: #{self_attention_pallas.3} parent=0
    _
  %s11 = ssub.s32 1, %s9
  %s12 = scalar_select 0, %s11, %s9
  %13 = sst [smem:[#allocation2]] %s5
  $region1: #{self_attention_pallas.3} parent=0
    #allocation3 [shape = 'u8[65536]{0}', space=vmem, size = 0x10000, scoped, tag = 'output window, operand 0']
    #allocation4 [shape = 's32[2]{0}', space=sflag, size = 0x8, scoped, tag = 'scoped memory for self_attention_pallas.3']
    #allocation5 [shape = 'u8[65536]{0}', space=vmem, size = 0x10000, scoped, tag = 'output window, operand 1']
    #allocation6 [shape = 's32[2]{0}', space=sflag, size = 0x8, scoped, tag = 'scoped memory for self_attention_pallas.3']
    %14 = vsyncpa [#allocation4], 0
    %s15 = scalar_lea.sflag [#allocation4], 1
    %16 = vsyncpa %s15, 0
    %17 = vsyncpa [#allocation6], 0
    %s18 = scalar_lea.sflag [#allocation6], 1
    %19 = vsyncpa %s18, 0
    loop: start=0, step=1, limit=4
    $region2: #{self_attention_pallas.3} parent=1 // loop_pre_header
      _
    $region3: #{self_attention_pallas.3} parent=1 // loop_header
      %s21 = sphi 0, %s25
      %p22 = scmp.ge.s32.totalorder %s21, 4
      %s28 = sphi 0, %s40
      %s29 = sphi 0, %s36
      %s30 = sphi 0, %s28
      %s31 = sphi 0, %s29
      %s32 = sphi 0, %s30
      %s33 = sphi 0, %s31
      %s45 = sphi 0, %s47
      %s48 = sphi 0, %s45
      %s49 = sphi 0, %s48
      %s65 = sphi 0, %s49
      %s69 = sphi 0, %s69
      %s71 = sphi 0, %s69
      %s72 = sphi 0, %s71
      %s86 = sphi 0, %s72
      %s90 = sphi 0, %s90
      %s92 = sphi 0, %s90
      %s93 = sphi 0, %s92
      %s107 = sphi 0, %s93
      %s113 = sphi 0, %s115
      %s116 = sphi 0, %s113
      %s117 = sphi 0, %s116
      %s133 = sphi 0, %s117
      %s139 = sphi 0, %s141
      %s142 = sphi 0, %s139
      %s143 = sphi 0, %s142
      %s159 = sphi 0, %s143
      %s163 = sphi 0, %s163
      %s165 = sphi 0, %s163
      %s166 = sphi 0, %s165
      %s180 = sphi 0, %s166
      %s188 = sphi 0, %s190
      %s191 = sphi 0, %s188
      %s192 = sphi 0, %s191
      %s208 = sphi 0, %s192
      %s216 = sphi 0, %s218
      %s219 = sphi 0, %s216
      %s220 = sphi 0, %s219
      %s236 = sphi 0, %s220
    $region4: #{self_attention_pallas.3} parent=1 // loop_header_branch
      %24 = sbr.rel (%p22) target = $region8
    $region5: #{self_attention_pallas.3} parent=1 // loop_body
      %s26 = ssub.s32 %s21, 1
      %s27 = ssub.s32 %s21, 2
      %s34 = sadd.s32 1, %s29
      %p35 = scmp.ge.s32.totalorder %s34, 1
      %s36 = scalar_select %p35, 0, %s34
      %s37 = sadd.s32 1, %s28
      %s38 = scalar_select %p35, %s37, %s28
      %p39 = scmp.ge.s32.totalorder %s38, 2
      %s40 = scalar_select %p39, 0, %s38
      %s41 = ssub.s32 %s28, %s40
      %s42 = ssub.s32 %s29, %s36
      %s43 = sor.u32 %s41, %s42
      %p44 = scmp.eq.s32.totalorder %s43, 0
      %s46 = sadd.s32 %s45, 1
      %s47 = scalar_select %p44, %s45, %s46
      %p50 = pneg %p44
      %p51 = scmp.eq.s32.totalorder %s21, 1
      %p52 = por %p50, %p51
      %p53 = scmp.ne.s32.totalorder %s45, %s48
      %p54 = scmp.eq.s32.totalorder %s21, 0
      %p55 = por %p53, %p54
      %p56 = scmp.ne.s32.totalorder %s45, %s48
      %p57 = scmp.eq.s32.totalorder %s26, 1
      %p58 = por %p56, %p57
      %p59 = scmp.ne.s32.totalorder %s48, %s49
      %p60 = scmp.eq.s32.totalorder %s26, 0
      %p61 = por %p59, %p60
      %p62 = scmp.ne.s32.totalorder %s48, %s49
      %p63 = scmp.eq.s32.totalorder %s27, 1
      %p64 = por %p62, %p63
      %p66 = scmp.ne.s32.totalorder %s49, %s65
      %p67 = scmp.eq.s32.totalorder %s27, 0
      %p68 = por %p66, %p67
      %s70 = sadd.s32 %s69, 1
      %p73 = scmp.eq.s32.totalorder %s21, 1
      %p74 = scmp.ne.s32.totalorder %s69, %s71
      %p75 = scmp.eq.s32.totalorder %s21, 0
      %p76 = por %p74, %p75
      %p77 = scmp.ne.s32.totalorder %s69, %s71
      %p78 = scmp.eq.s32.totalorder %s26, 1
      %p79 = por %p77, %p78
      %p80 = scmp.ne.s32.totalorder %s71, %s72
      %p81 = scmp.eq.s32.totalorder %s26, 0
      %p82 = por %p80, %p81
      %p83 = scmp.ne.s32.totalorder %s71, %s72
      %p84 = scmp.eq.s32.totalorder %s27, 1
      %p85 = por %p83, %p84
      %p87 = scmp.ne.s32.totalorder %s72, %s86
      %p88 = scmp.eq.s32.totalorder %s27, 0
      %p89 = por %p87, %p88
      %s91 = sadd.s32 %s90, 1
      %p94 = scmp.eq.s32.totalorder %s21, 1
      %p95 = scmp.ne.s32.totalorder %s90, %s92
      %p96 = scmp.eq.s32.totalorder %s21, 0
      %p97 = por %p95, %p96
      %p98 = scmp.ne.s32.totalorder %s90, %s92
      %p99 = scmp.eq.s32.totalorder %s26, 1
      %p100 = por %p98, %p99
      %p101 = scmp.ne.s32.totalorder %s92, %s93
      %p102 = scmp.eq.s32.totalorder %s26, 0
      %p103 = por %p101, %p102
      %p104 = scmp.ne.s32.totalorder %s92, %s93
      %p105 = scmp.eq.s32.totalorder %s27, 1
      %p106 = por %p104, %p105
      %p108 = scmp.ne.s32.totalorder %s93, %s107
      %p109 = scmp.eq.s32.totalorder %s27, 0
      %p110 = por %p108, %p109
      %s111 = ssub.s32 %s28, %s40
      %p112 = scmp.eq.s32.totalorder %s111, 0
      %s114 = sadd.s32 %s113, 1
      %s115 = scalar_select %p112, %s113, %s114
      %p118 = pneg %p112
      %p119 = scmp.eq.s32.totalorder %s21, 1
      %p120 = por %p118, %p119
      %p121 = scmp.ne.s32.totalorder %s113, %s116
      %p122 = scmp.eq.s32.totalorder %s21, 0
      %p123 = por %p121, %p122
      %p124 = scmp.ne.s32.totalorder %s113, %s116
      %p125 = scmp.eq.s32.totalorder %s26, 1
      %p126 = por %p124, %p125
      %p127 = scmp.ne.s32.totalorder %s116, %s117
      %p128 = scmp.eq.s32.totalorder %s26, 0
      %p129 = por %p127, %p128
      %p130 = scmp.ne.s32.totalorder %s116, %s117
      %p131 = scmp.eq.s32.totalorder %s27, 1
      %p132 = por %p130, %p131
      %p134 = scmp.ne.s32.totalorder %s117, %s133
      %p135 = scmp.eq.s32.totalorder %s27, 0
      %p136 = por %p134, %p135
      %s137 = ssub.s32 %s28, %s40
      %p138 = scmp.eq.s32.totalorder %s137, 0
      %s140 = sadd.s32 %s139, 1
      %s141 = scalar_select %p138, %s139, %s140
      %p144 = pneg %p138
      %p145 = scmp.eq.s32.totalorder %s21, 1
      %p146 = por %p144, %p145
      %p147 = scmp.ne.s32.totalorder %s139, %s142
      %p148 = scmp.eq.s32.totalorder %s21, 0
      %p149 = por %p147, %p148
      %p150 = scmp.ne.s32.totalorder %s139, %s142
      %p151 = scmp.eq.s32.totalorder %s26, 1
      %p152 = por %p150, %p151
      %p153 = scmp.ne.s32.totalorder %s142, %s143
      %p154 = scmp.eq.s32.totalorder %s26, 0
      %p155 = por %p153, %p154
      %p156 = scmp.ne.s32.totalorder %s142, %s143
      %p157 = scmp.eq.s32.totalorder %s27, 1
      %p158 = por %p156, %p157
      %p160 = scmp.ne.s32.totalorder %s143, %s159
      %p161 = scmp.eq.s32.totalorder %s27, 0
      %p162 = por %p160, %p161
      %s164 = sadd.s32 %s163, 1
      %p167 = scmp.eq.s32.totalorder %s21, 1
      %p168 = scmp.ne.s32.totalorder %s163, %s165
      %p169 = scmp.eq.s32.totalorder %s21, 0
      %p170 = por %p168, %p169
      %p171 = scmp.ne.s32.totalorder %s163, %s165
      %p172 = scmp.eq.s32.totalorder %s26, 1
      %p173 = por %p171, %p172
      %p174 = scmp.ne.s32.totalorder %s165, %s166
      %p175 = scmp.eq.s32.totalorder %s26, 0
      %p176 = por %p174, %p175
      %p177 = scmp.ne.s32.totalorder %s165, %s166
      %p178 = scmp.eq.s32.totalorder %s27, 1
      %p179 = por %p177, %p178
      %p181 = scmp.ne.s32.totalorder %s166, %s180
      %p182 = scmp.eq.s32.totalorder %s27, 0
      %p183 = por %p181, %p182
      %s184 = ssub.s32 %s28, %s40
      %s185 = ssub.s32 %s29, %s36
      %s186 = sor.u32 %s184, %s185
      %p187 = scmp.eq.s32.totalorder %s186, 0
      %s189 = sadd.s32 %s188, 1
      %s190 = scalar_select %p187, %s188, %s189
      %p193 = pneg %p187
      %p194 = scmp.eq.s32.totalorder %s21, 1
      %p195 = por %p193, %p194
      %p196 = scmp.ne.s32.totalorder %s188, %s191
      %p197 = scmp.eq.s32.totalorder %s21, 0
      %p198 = por %p196, %p197
      %p199 = scmp.ne.s32.totalorder %s188, %s191
      %p200 = scmp.eq.s32.totalorder %s26, 1
      %p201 = por %p199, %p200
      %p202 = scmp.ne.s32.totalorder %s191, %s192
      %p203 = scmp.eq.s32.totalorder %s26, 0
      %p204 = por %p202, %p203
      %p205 = scmp.ne.s32.totalorder %s191, %s192
      %p206 = scmp.eq.s32.totalorder %s27, 1
      %p207 = por %p205, %p206
      %p209 = scmp.ne.s32.totalorder %s192, %s208
      %p210 = scmp.eq.s32.totalorder %s27, 0
      %p211 = por %p209, %p210
      %s212 = ssub.s32 %s28, %s40
      %s213 = ssub.s32 %s29, %s36
      %s214 = sor.u32 %s212, %s213
      %p215 = scmp.eq.s32.totalorder %s214, 0
      %s217 = sadd.s32 %s216, 1
      %s218 = scalar_select %p215, %s216, %s217
      %p221 = pneg %p215
      %p222 = scmp.eq.s32.totalorder %s21, 1
      %p223 = por %p221, %p222
      %p224 = scmp.ne.s32.totalorder %s216, %s219
      %p225 = scmp.eq.s32.totalorder %s21, 0
      %p226 = por %p224, %p225
      %p227 = scmp.ne.s32.totalorder %s216, %s219
      %p228 = scmp.eq.s32.totalorder %s26, 1
      %p229 = por %p227, %p228
      %p230 = scmp.ne.s32.totalorder %s219, %s220
      %p231 = scmp.eq.s32.totalorder %s26, 0
      %p232 = por %p230, %p231
      %p233 = scmp.ne.s32.totalorder %s219, %s220
      %p234 = scmp.eq.s32.totalorder %s27, 1
      %p235 = por %p233, %p234
      %p237 = scmp.ne.s32.totalorder %s220, %s236
      %p238 = scmp.eq.s32.totalorder %s27, 0
      %p239 = por %p237, %p238
      %p240 = scmp.le.s32.totalorder 1, %s21
      %p241 = scmp.lt.s32.totalorder %s21, 3
      %p242 = pnand %p240, %p241
      %p243 = pneg %p242
      // Predicated region
      $region9: #{self_attention_pallas.3} parent=5 // pred_check
        _
      $region10: #{self_attention_pallas.3} parent=5 // pred_check_branch
        %245 = sbr.rel (%p242) target = $region12
      $region11: #{self_attention_pallas.3} parent=5 // pred_region
        %s246 = ssub.s32 %s21, 1
        // Predicated region
        $region13: #{self_attention_pallas.3} parent=11 // pred_check
          %p247 = pneg %p82
        $region14: #{self_attention_pallas.3} parent=11 // pred_check_branch
          %249 = sbr.rel (%p247) target = $region16
        $region15: #{self_attention_pallas.3} parent=11 // pred_region
          _
        $region16: #{self_attention_pallas.3} parent=11 // pred_fallthru
          _
        // Predicated region
        $region17: #{self_attention_pallas.3} parent=11 // pred_check
          %p250 = pneg %p103
        $region18: #{self_attention_pallas.3} parent=11 // pred_check_branch
          %252 = sbr.rel (%p250) target = $region20
        $region19: #{self_attention_pallas.3} parent=11 // pred_region
          _
        $region20: #{self_attention_pallas.3} parent=11 // pred_fallthru
          _
        // Predicated region
        $region21: #{self_attention_pallas.3} parent=11 // pred_check
          %p253 = pneg %p176
        $region22: #{self_attention_pallas.3} parent=11 // pred_check_branch
          %255 = sbr.rel (%p253) target = $region24
        $region23: #{self_attention_pallas.3} parent=11 // pred_region
          _
        $region24: #{self_attention_pallas.3} parent=11 // pred_fallthru
          _
      $region12: #{self_attention_pallas.3} parent=5 // pred_fallthru
        _
      %p256 = scmp.lt.s32.totalorder %s21, 2
      // Predicated region
      $region25: #{self_attention_pallas.3} parent=5 // pred_check
        %p257 = pneg %p256
      $region26: #{self_attention_pallas.3} parent=5 // pred_check_branch
        %259 = sbr.rel (%p257) target = $region28
      $region27: #{self_attention_pallas.3} parent=5 // pred_region
        // Predicated region
        $region29: #{self_attention_pallas.3} parent=27 // pred_check
          %p260 = pneg %p55
        $region30: #{self_attention_pallas.3} parent=27 // pred_check_branch
          %262 = sbr.rel (%p260) target = $region32
        $region31: #{self_attention_pallas.3} parent=27 // pred_region
          %s263 = smul.u32 8, %s29
          %p264 = scmp.lt.s32.totalorder %s28, 1
          %s265 = scalar_select %p264, %s28, 1
          %p266 = scmp.lt.s32.totalorder %s263, 7
          %s267 = scalar_select %p266, %s263, 7
          %s268 = smul.addr %s265, 8
          %s269 = sadd.s32 %s267, %s268
          %s270 = smul.addr %s269, 8
          %s271 = scalar_lea.vmem %s0, %s270
          %s272 = smul.u32 8, %s29
        $region32: #{self_attention_pallas.3} parent=27 // pred_fallthru
          _
        // Predicated region
        $region33: #{self_attention_pallas.3} parent=27 // pred_check
          %p273 = pneg %p123
        $region34: #{self_attention_pallas.3} parent=27 // pred_check_branch
          %275 = sbr.rel (%p273) target = $region36
        $region35: #{self_attention_pallas.3} parent=27 // pred_region
          %p276 = scmp.lt.s32.totalorder %s28, 1
          %s277 = scalar_select %p276, %s28, 1
          %s278 = scalar_lea.vmem %s3, %s277
        $region36: #{self_attention_pallas.3} parent=27 // pred_fallthru
          _
        // Predicated region
        $region37: #{self_attention_pallas.3} parent=27 // pred_check
          %p279 = pneg %p149
        $region38: #{self_attention_pallas.3} parent=27 // pred_check_branch
          %281 = sbr.rel (%p279) target = $region40
        $region39: #{self_attention_pallas.3} parent=27 // pred_region
          %p282 = scmp.lt.s32.totalorder %s28, 1
          %s283 = scalar_select %p282, %s28, 1
          %s284 = smul.addr %s283, 8
          %s285 = smul.addr %s284, 4
          %s286 = scalar_lea.vmem %s4, %s285
        $region40: #{self_attention_pallas.3} parent=27 // pred_fallthru
          _
      $region28: #{self_attention_pallas.3} parent=5 // pred_fallthru
        _
      %p287 = scmp.le.s32.totalorder 1, %s21
      %p288 = scmp.lt.s32.totalorder %s21, 3
      %p289 = pnand %p287, %p288
      %p290 = pneg %p289
      // Predicated region
      $region41: #{self_attention_pallas.3} parent=5 // pred_check
        _
      $region42: #{self_attention_pallas.3} parent=5 // pred_check_branch
        %292 = sbr.rel (%p289) target = $region44
      $region43: #{self_attention_pallas.3} parent=5 // pred_region
        %s293 = ssub.s32 %s21, 1
        %s294 = smul.u32 8, %s31
        %p295 = scmp.lt.s32.totalorder %s30, 1
        %s296 = scalar_select %p295, %s30, 1
        %p297 = scmp.lt.s32.totalorder %s294, 7
        %s298 = scalar_select %p297, %s294, 7
        %s299 = smul.addr %s296, 8
        %s300 = sadd.s32 %s298, %s299
        %s301 = smul.addr %s300, 8
        %s302 = scalar_lea.vmem %s0, %s301
        %p303 = pneg %p61
        %p304 = pneg %p58
        %p305 = pneg %p82
        %p306 = pneg %p79
        %p307 = pneg %p103
        %p308 = pneg %p100
        %p309 = scmp.lt.s32.totalorder %s30, 1
        %s310 = scalar_select %p309, %s30, 1
        %s311 = scalar_lea.vmem %s3, %s310
        %p312 = pneg %p129
        %p313 = pneg %p126
        %p314 = scmp.lt.s32.totalorder %s30, 1
        %s315 = scalar_select %p314, %s30, 1
        %s316 = smul.addr %s315, 8
        %s317 = smul.addr %s316, 4
        %s318 = scalar_lea.vmem %s4, %s317
        %p319 = pneg %p155
        %p320 = pneg %p152
        %p321 = pneg %p176
        %p322 = pneg %p173
        %p323 = pneg %p204
        %p324 = pneg %p201
        %s325 = sand.u32 %s191, 1
        %s326 = scalar_lea.sflag [#allocation4], %s325
        %s327 = sand.u32 %s191, 1
        %s328 = smul.addr %s327, 64
        %s329 = scalar_lea.vmem [#allocation3], %s328
        %p330 = pneg %p232
        %p331 = pneg %p229
        %s332 = sand.u32 %s219, 1
        %s333 = scalar_lea.sflag [#allocation6], %s332
        %s334 = sand.u32 %s219, 1
        %s335 = smul.addr %s334, 64
        %s336 = scalar_lea.vmem [#allocation5], %s335
        %s337 = smul.u32 8, %s31
        %p338 = scmp.lt.s32.totalorder %s30, 1
        %s339 = scalar_select %p338, %s30, 1
        %p340 = scmp.lt.s32.totalorder %s337, 7
        %s341 = scalar_select %p340, %s337, 7
        %s342 = smul.addr %s339, 8
        %s343 = sadd.s32 %s341, %s342
        %s344 = smul.addr %s343, 8
        %s345 = scalar_lea.vmem %s0, %s344
        %s346 = smul.u32 8, %s31
        %p347 = scmp.lt.s32.totalorder %s30, 1
        %s348 = scalar_select %p347, %s30, 1
        %s349 = scalar_lea.vmem %s3, %s348
        %p350 = scmp.lt.s32.totalorder %s30, 1
        %s351 = scalar_select %p350, %s30, 1
        %s352 = smul.addr %s351, 8
        %s353 = smul.addr %s352, 4
        %s354 = scalar_lea.vmem %s4, %s353
        %s355 = smul.u32 8, %s31
        %s356 = smul.u32 8, %s31
        %v358 = vld [vmem:[%s345] sm:$0xff]
        %v359 = vld [vmem:[%s345 + $0x8] sm:$0xff]
        %v360 = vld [vmem:[%s345 + $0x10] sm:$0xff]
        %v361 = vld [vmem:[%s345 + $0x18] sm:$0xff]
        %v362 = vld [vmem:[%s345 + $0x20] sm:$0xff]
        %v363 = vld [vmem:[%s345 + $0x28] sm:$0xff]
        %v364 = vld [vmem:[%s345 + $0x30] sm:$0xff]
        %v365 = vld [vmem:[%s345 + $0x38] sm:$0xff]
        %v366 = vpack.c.bf16 %v359, %v358
        %v367 = vpack.c.bf16 %v361, %v360
        %v368 = vpack.c.bf16 %v363, %v362
        %v369 = vpack.c.bf16 %v365, %v364
        %v370 = vld [vmem:[%s1] sm:$0xf]
        %v371 = vld [vmem:[%s1 + $0x4] sm:$0xf]
        %v372 = vld [vmem:[%s2] sm:$0x1]
        %v374 = vperm.slane %v372, 0
        %v378 = vunpack.c.l.b16 %v370
        %v379 = vunpack.c.l.b16 %v371
        %v380 = vpack.c.b16 %v379, %v378
        %vm382 = vcmask 130048
        %v384 = vsel %vm382, %v366, 0
        %v387 = vsel %vm382, %v367, 0
        %v390 = vsel %vm382, %v368, 0
        %v393 = vsel %vm382, %v369, 0
        %395 = vmatpush.bf16.msra.mxu0 0
        %396 = vmatpush.bf16.msra.mxu0 0
        %397 = vmatpush.bf16.msra.mxu0 0
        %398 = vmatpush.bf16.msra.mxu0 0
        %399 = vmatpush.bf16.msra.mxu0 0
        %400 = vmatpush.bf16.msra.mxu0 0
        %401 = vmatpush.bf16.msra.mxu0 0
        %402 = vmatpush.bf16.msra.mxu0 %v380
        %403 = vmatmul.bf16.gmra.mxu0 %v384
        %v404 = vpop.f32.mrf.mxu0
        %v405 = vadd.f32 %v374, %v404
        %v406 = vpop.f32.mrf.mxu0
        %v407 = vadd.f32 %v374, %v406
        %408 = vmatmul.bf16.gmra.mxu0 %v387
        %v409 = vpop.f32.mrf.mxu0
        %v410 = vadd.f32 %v374, %v409
        %v411 = vpop.f32.mrf.mxu0
        %v412 = vadd.f32 %v374, %v411
        %413 = vmatmul.bf16.gmra.mxu0 %v390
        %v414 = vpop.f32.mrf.mxu0
        %v415 = vadd.f32 %v374, %v414
        %v416 = vpop.f32.mrf.mxu0
        %v417 = vadd.f32 %v374, %v416
        %418 = vmatmul.bf16.gmra.mxu0 %v393
        %v419 = vpop.f32.mrf.mxu0
        %v420 = vadd.f32 %v374, %v419
        %v421 = vpop.f32.mrf.mxu0
        %v422 = vadd.f32 %v374, %v421
        %423 = vdwg.mxu0
        %v424 = vpack.c.bf16 %v407, %v405
        %v425 = vpack.c.bf16 %v412, %v410
        %v426 = vpack.c.bf16 %v417, %v415
        %v427 = vpack.c.bf16 %v422, %v420
        %v428 = vld [vmem:[%s349] sm:$0x1]
        %vm429 = vcmask 15360
        %v431 = vsel %vm429, %v424, 0
        %v434 = vsel %vm429, %v425, 0
        %v437 = vsel %vm429, %v426, 0
        %v440 = vsel %vm429, %v427, 0
        %vm442 = vcmask 1040384
        %v444 = vsel %vm442, %v428, 0
        %446 = vmatpush.bf16.msra.mxu0 0
        %447 = vmatpush.bf16.msra.mxu0 0
        %448 = vmatpush.bf16.msra.mxu0 0
        %449 = vmatpush.bf16.msra.mxu0 0
        %450 = vmatpush.bf16.msra.mxu0 0
        %451 = vmatpush.bf16.msra.mxu0 0
        %452 = vmatpush.bf16.msra.mxu0 0
        %453 = vmatpush.bf16.msra.mxu0 %v444
        %454 = vmatmul.bf16.gmra.mxu0 %v431
        %v455 = vpop.f32.mrf.mxu0
        %v456 = vadd.f32 0.0, %v455
        %v457 = vpop.f32.mrf.mxu0
        %v458 = vadd.f32 0.0, %v457
        %459 = vmatmul.bf16.gmra.mxu0 %v434
        %v460 = vpop.f32.mrf.mxu0
        %v461 = vadd.f32 0.0, %v460
        %v462 = vpop.f32.mrf.mxu0
        %v463 = vadd.f32 0.0, %v462
        %464 = vmatmul.bf16.gmra.mxu0 %v437
        %v465 = vpop.f32.mrf.mxu0
        %v466 = vadd.f32 0.0, %v465
        %v467 = vpop.f32.mrf.mxu0
        %v468 = vadd.f32 0.0, %v467
        %469 = vmatmul.bf16.gmra.mxu0 %v440
        %v470 = vpop.f32.mrf.mxu0
        %v471 = vadd.f32 0.0, %v470
        %v472 = vpop.f32.mrf.mxu0
        %v473 = vadd.f32 0.0, %v472
        %474 = vdwg.mxu0
        %vm475 = vcmask 523264
        %v476 = vsel %vm475, %v456, -inf
        %477 = vmax.xlane.f32.xlu0 %v476
        %v478 = vpop.xlane.xlu0 %477
        %v479 = vsel %vm475, %v458, -inf
        %480 = vmax.xlane.f32.xlu0 %v479
        %v481 = vpop.xlane.xlu0 %480
        %v482 = vsel %vm475, %v461, -inf
        %483 = vmax.xlane.f32.xlu0 %v482
        %v484 = vpop.xlane.xlu0 %483
        %v485 = vsel %vm475, %v463, -inf
        %486 = vmax.xlane.f32.xlu0 %v485
        %v487 = vpop.xlane.xlu0 %486
        %v488 = vsel %vm475, %v466, -inf
        %489 = vmax.xlane.f32.xlu0 %v488
        %v490 = vpop.xlane.xlu0 %489
        %v491 = vsel %vm475, %v468, -inf
        %492 = vmax.xlane.f32.xlu0 %v491
        %v493 = vpop.xlane.xlu0 %492
        %v494 = vsel %vm475, %v471, -inf
        %495 = vmax.xlane.f32.xlu0 %v494
        %v496 = vpop.xlane.xlu0 %495
        %v497 = vsel %vm475, %v473, -inf
        %498 = vmax.xlane.f32.xlu0 %v497
        %v499 = vpop.xlane.xlu0 %498
        %v500 = vsub.f32 %v456, %v478
        %v501 = vsub.f32 %v458, %v481
        %v502 = vsub.f32 %v461, %v484
        %v503 = vsub.f32 %v463, %v487
        %v504 = vsub.f32 %v466, %v490
        %v505 = vsub.f32 %v468, %v493
        %v506 = vsub.f32 %v471, %v496
        %v507 = vsub.f32 %v473, %v499
        %v508 = vmul.f32 %v500, 1.442695
        %v509 = vpow.pop %v508
        %v510 = vmul.f32 %v501, 1.442695
        %v511 = vpow.pop %v510
        %v512 = vmul.f32 %v502, 1.442695
        %v513 = vpow.pop %v512
        %v514 = vmul.f32 %v503, 1.442695
        %v515 = vpow.pop %v514
        %v516 = vmul.f32 %v504, 1.442695
        %v517 = vpow.pop %v516
        %v518 = vmul.f32 %v505, 1.442695
        %v519 = vpow.pop %v518
        %v520 = vmul.f32 %v506, 1.442695
        %v521 = vpow.pop %v520
        %v522 = vmul.f32 %v507, 1.442695
        %v523 = vpow.pop %v522
        %v524 = vsel %vm475, %v509, 0.0
        %525 = vadd.xlane.f32.xlu0 %v524
        %v526 = vpop.xlane.xlu0 %525
        %v527 = vsel %vm475, %v511, 0.0
        %528 = vadd.xlane.f32.xlu0 %v527
        %v529 = vpop.xlane.xlu0 %528
        %v530 = vsel %vm475, %v513, 0.0
        %531 = vadd.xlane.f32.xlu0 %v530
        %v532 = vpop.xlane.xlu0 %531
        %v533 = vsel %vm475, %v515, 0.0
        %534 = vadd.xlane.f32.xlu0 %v533
        %v535 = vpop.xlane.xlu0 %534
        %v536 = vsel %vm475, %v517, 0.0
        %537 = vadd.xlane.f32.xlu0 %v536
        %v538 = vpop.xlane.xlu0 %537
        %v539 = vsel %vm475, %v519, 0.0
        %540 = vadd.xlane.f32.xlu0 %v539
        %v541 = vpop.xlane.xlu0 %540
        %v542 = vsel %vm475, %v521, 0.0
        %543 = vadd.xlane.f32.xlu0 %v542
        %v544 = vpop.xlane.xlu0 %543
        %v545 = vsel %vm475, %v523, 0.0
        %546 = vadd.xlane.f32.xlu0 %v545
        %v547 = vpop.xlane.xlu0 %546
        %v548 = vrcp.pop %v526
        %v549 = vmul.f32 %v526, %v548
        %v550 = vsub.f32 1.0, %v549
        %v551 = vmul.f32 %v548, %v550
        %v552 = vadd.f32 %v548, %v551
        %vm553 = vweird.f32 %v526
        %vm554 = vweird.f32 %v548
        %vm555 = vmor %vm553, %vm554
        %v556 = vsel %vm555, %v548, %v552
        %v557 = vand.u32 2147483647, %v526
        %vm558 = vcmp.eq.f32.partialorder %v557, 8.507059e+37
        %v559 = vand.u32 %v526, 2147483648
        %v560 = vor.u32 1.1754944e-38, %v559
        %v561 = vsel %vm558, %v560, %v556
        %v562 = vrcp.pop %v529
        %v563 = vmul.f32 %v529, %v562
        %v564 = vsub.f32 1.0, %v563
        %v565 = vmul.f32 %v562, %v564
        %v566 = vadd.f32 %v562, %v565
        %vm567 = vweird.f32 %v529
        %vm568 = vweird.f32 %v562
        %vm569 = vmor %vm567, %vm568
        %v570 = vsel %vm569, %v562, %v566
        %v571 = vand.u32 2147483647, %v529
        %vm572 = vcmp.eq.f32.partialorder %v571, 8.507059e+37
        %v573 = vand.u32 %v529, 2147483648
        %v574 = vor.u32 1.1754944e-38, %v573
        %v575 = vsel %vm572, %v574, %v570
        %v576 = vrcp.pop %v532
        %v577 = vmul.f32 %v532, %v576
        %v578 = vsub.f32 1.0, %v577
        %v579 = vmul.f32 %v576, %v578
        %v580 = vadd.f32 %v576, %v579
        %vm581 = vweird.f32 %v532
        %vm582 = vweird.f32 %v576
        %vm583 = vmor %vm581, %vm582
        %v584 = vsel %vm583, %v576, %v580
        %v585 = vand.u32 2147483647, %v532
        %vm586 = vcmp.eq.f32.partialorder %v585, 8.507059e+37
        %v587 = vand.u32 %v532, 2147483648
        %v588 = vor.u32 1.1754944e-38, %v587
        %v589 = vsel %vm586, %v588, %v584
        %v590 = vrcp.pop %v535
        %v591 = vmul.f32 %v535, %v590
        %v592 = vsub.f32 1.0, %v591
        %v593 = vmul.f32 %v590, %v592
        %v594 = vadd.f32 %v590, %v593
        %vm595 = vweird.f32 %v535
        %vm596 = vweird.f32 %v590
        %vm597 = vmor %vm595, %vm596
        %v598 = vsel %vm597, %v590, %v594
        %v599 = vand.u32 2147483647, %v535
        %vm600 = vcmp.eq.f32.partialorder %v599, 8.507059e+37
        %v601 = vand.u32 %v535, 2147483648
        %v602 = vor.u32 1.1754944e-38, %v601
        %v603 = vsel %vm600, %v602, %v598
        %v604 = vrcp.pop %v538
        %v605 = vmul.f32 %v538, %v604
        %v606 = vsub.f32 1.0, %v605
        %v607 = vmul.f32 %v604, %v606
        %v608 = vadd.f32 %v604, %v607
        %vm609 = vweird.f32 %v538
        %vm610 = vweird.f32 %v604
        %vm611 = vmor %vm609, %vm610
        %v612 = vsel %vm611, %v604, %v608
        %v613 = vand.u32 2147483647, %v538
        %vm614 = vcmp.eq.f32.partialorder %v613, 8.507059e+37
        %v615 = vand.u32 %v538, 2147483648
        %v616 = vor.u32 1.1754944e-38, %v615
        %v617 = vsel %vm614, %v616, %v612
        %v618 = vrcp.pop %v541
        %v619 = vmul.f32 %v541, %v618
        %v620 = vsub.f32 1.0, %v619
        %v621 = vmul.f32 %v618, %v620
        %v622 = vadd.f32 %v618, %v621
        %vm623 = vweird.f32 %v541
        %vm624 = vweird.f32 %v618
        %vm625 = vmor %vm623, %vm624
        %v626 = vsel %vm625, %v618, %v622
        %v627 = vand.u32 2147483647, %v541
        %vm628 = vcmp.eq.f32.partialorder %v627, 8.507059e+37
        %v629 = vand.u32 %v541, 2147483648
        %v630 = vor.u32 1.1754944e-38, %v629
        %v631 = vsel %vm628, %v630, %v626
        %v632 = vrcp.pop %v544
        %v633 = vmul.f32 %v544, %v632
        %v634 = vsub.f32 1.0, %v633
        %v635 = vmul.f32 %v632, %v634
        %v636 = vadd.f32 %v632, %v635
        %vm637 = vweird.f32 %v544
        %vm638 = vweird.f32 %v632
        %vm639 = vmor %vm637, %vm638
        %v640 = vsel %vm639, %v632, %v636
        %v641 = vand.u32 2147483647, %v544
        %vm642 = vcmp.eq.f32.partialorder %v641, 8.507059e+37
        %v643 = vand.u32 %v544, 2147483648
        %v644 = vor.u32 1.1754944e-38, %v643
        %v645 = vsel %vm642, %v644, %v640
        %v646 = vrcp.pop %v547
        %v647 = vmul.f32 %v547, %v646
        %v648 = vsub.f32 1.0, %v647
        %v649 = vmul.f32 %v646, %v648
        %v650 = vadd.f32 %v646, %v649
        %vm651 = vweird.f32 %v547
        %vm652 = vweird.f32 %v646
        %vm653 = vmor %vm651, %vm652
        %v654 = vsel %vm653, %v646, %v650
        %v655 = vand.u32 2147483647, %v547
        %vm656 = vcmp.eq.f32.partialorder %v655, 8.507059e+37
        %v657 = vand.u32 %v547, 2147483648
        %v658 = vor.u32 1.1754944e-38, %v657
        %v659 = vsel %vm656, %v658, %v654
        %v660 = vmul.f32 %v509, %v561
        %v661 = vmul.f32 %v511, %v575
        %v662 = vmul.f32 %v513, %v589
        %v663 = vmul.f32 %v515, %v603
        %v664 = vmul.f32 %v517, %v617
        %v665 = vmul.f32 %v519, %v631
        %v666 = vmul.f32 %v521, %v645
        %v667 = vmul.f32 %v523, %v659
        %v668 = vpack.c.bf16 %v661, %v660
        %v669 = vpack.c.bf16 %v663, %v662
        %v670 = vpack.c.bf16 %v665, %v664
        %v671 = vpack.c.bf16 %v667, %v666
        %v672 = vld [vmem:[%s354] sm:$0xf]
        %v673 = vld [vmem:[%s354 + $0x4] sm:$0xf]
        %v674 = vld [vmem:[%s354 + $0x8] sm:$0xf]
        %v675 = vld [vmem:[%s354 + $0xc] sm:$0xf]
        %v676 = vld [vmem:[%s354 + $0x10] sm:$0xf]
        %v677 = vld [vmem:[%s354 + $0x14] sm:$0xf]
        %v678 = vld [vmem:[%s354 + $0x18] sm:$0xf]
        %v679 = vld [vmem:[%s354 + $0x1c] sm:$0xf]
        %v688 = vunpack.c.l.b16 %v672
        %v689 = vunpack.c.l.b16 %v673
        %v690 = vunpack.c.l.b16 %v674
        %v691 = vunpack.c.l.b16 %v675
        %v692 = vunpack.c.l.b16 %v676
        %v693 = vunpack.c.l.b16 %v677
        %v694 = vunpack.c.l.b16 %v678
        %v695 = vunpack.c.l.b16 %v679
        %v696 = vpack.c.b16 %v689, %v688
        %v697 = vpack.c.b16 %v691, %v690
        %v698 = vpack.c.b16 %v693, %v692
        %v699 = vpack.c.b16 %v695, %v694
        %v705 = vsel %vm475, %v668, 0
        %v708 = vsel %vm475, %v669, 0
        %v711 = vsel %vm475, %v670, 0
        %v714 = vsel %vm475, %v671, 0
        %716 = vmatpush.bf16.msra.mxu0 0
        %717 = vmatpush.bf16.msra.mxu0 0
        %718 = vmatpush.bf16.msra.mxu0 0
        %719 = vmatpush.bf16.msra.mxu0 0
        %720 = vmatpush.bf16.msra.mxu0 %v699
        %721 = vmatpush.bf16.msra.mxu0 %v698
        %722 = vmatpush.bf16.msra.mxu0 %v697
        %723 = vmatpush.bf16.msra.mxu0 %v696
        %724 = vmatmul.bf16.gmra.mxu0 %v705
        %v725 = vpop.f32.mrf.mxu0
        %v726 = vadd.f32 0.0, %v725
        %v727 = vpop.f32.mrf.mxu0
        %v728 = vadd.f32 0.0, %v727
        %729 = vmatmul.bf16.gmra.mxu0 %v708
        %v730 = vpop.f32.mrf.mxu0
        %v731 = vadd.f32 0.0, %v730
        %v732 = vpop.f32.mrf.mxu0
        %v733 = vadd.f32 0.0, %v732
        %734 = vmatmul.bf16.gmra.mxu0 %v711
        %v735 = vpop.f32.mrf.mxu0
        %v736 = vadd.f32 0.0, %v735
        %v737 = vpop.f32.mrf.mxu0
        %v738 = vadd.f32 0.0, %v737
        %739 = vmatmul.bf16.gmra.mxu0 %v714
        %v740 = vpop.f32.mrf.mxu0
        %v741 = vadd.f32 0.0, %v740
        %v742 = vpop.f32.mrf.mxu0
        %v743 = vadd.f32 0.0, %v742
        %744 = vdwg.mxu0
        %s745 = sld [smem:[#allocation2]]
        %v746 = vstv %s745
        %v747 = vmul.f32 %v746, %v726
        %v748 = vmul.f32 %v746, %v728
        %v749 = vmul.f32 %v746, %v731
        %v750 = vmul.f32 %v746, %v733
        %v751 = vmul.f32 %v746, %v736
        %v752 = vmul.f32 %v746, %v738
        %v753 = vmul.f32 %v746, %v741
        %v754 = vmul.f32 %v746, %v743
        %v755 = vadd.f32 %v747, %v358
        %v756 = vadd.f32 %v748, %v359
        %v757 = vadd.f32 %v749, %v360
        %v758 = vadd.f32 %v750, %v361
        %v759 = vadd.f32 %v751, %v362
        %v760 = vadd.f32 %v752, %v363
        %v761 = vadd.f32 %v753, %v364
        %v762 = vadd.f32 %v754, %v365
        %763 = vst.msk [vmem:[%s329] sm:$0xff] %vm382, %v755
        %764 = vst.msk [vmem:[%s329 + $0x8] sm:$0xff] %vm382, %v756
        %765 = vst.msk [vmem:[%s329 + $0x10] sm:$0xff] %vm382, %v757
        %766 = vst.msk [vmem:[%s329 + $0x18] sm:$0xff] %vm382, %v758
        %767 = vst.msk [vmem:[%s329 + $0x20] sm:$0xff] %vm382, %v759
        %768 = vst.msk [vmem:[%s329 + $0x28] sm:$0xff] %vm382, %v760
        %769 = vst.msk [vmem:[%s329 + $0x30] sm:$0xff] %vm382, %v761
        %770 = vst.msk [vmem:[%s329 + $0x38] sm:$0xff] %vm382, %v762
        %771 = vst.msk [vmem:[%s336] sm:$0xff] %vm475, %v660
        %772 = vst.msk [vmem:[%s336 + $0x8] sm:$0xff] %vm475, %v661
        %773 = vst.msk [vmem:[%s336 + $0x10] sm:$0xff] %vm475, %v662
        %774 = vst.msk [vmem:[%s336 + $0x18] sm:$0xff] %vm475, %v663
        %775 = vst.msk [vmem:[%s336 + $0x20] sm:$0xff] %vm475, %v664
        %776 = vst.msk [vmem:[%s336 + $0x28] sm:$0xff] %vm475, %v665
        %777 = vst.msk [vmem:[%s336 + $0x30] sm:$0xff] %vm475, %v666
        %778 = vst.msk [vmem:[%s336 + $0x38] sm:$0xff] %vm475, %v667
        %s779 = sand.u32 %s191, 1
        %s780 = scalar_lea.sflag [#allocation4], %s779
        %s781 = sand.u32 %s191, 1
        %s782 = smul.addr %s781, 64
        %s783 = scalar_lea.vmem [#allocation3], %s782
        %s784 = sand.u32 %s219, 1
        %s785 = scalar_lea.sflag [#allocation6], %s784
        %s786 = sand.u32 %s219, 1
        %s787 = smul.addr %s786, 64
        %s788 = scalar_lea.vmem [#allocation5], %s787
        // Predicated region
        $region45: #{self_attention_pallas.3} parent=43 // pred_check
          %p789 = pneg %p201
        $region46: #{self_attention_pallas.3} parent=43 // pred_check_branch
          %791 = sbr.rel (%p789) target = $region48
        $region47: #{self_attention_pallas.3} parent=43 // pred_region
          %s792 = smul.u32 8, %s31
          %794 = vsyncadd %s780, 0
          %s795 = smul.addr %s30, 8
          %s796 = sadd.s32 %s792, %s795
          %s797 = smul.addr %s796, 8
          %s798 = scalar_lea.hbm %s6, %s797
          %s799 = sshll.u32 %s783, 4
          %s800 = int_to_ptr.vmem [resolvable:$true] %s799
          %s801 = sshll.u32 %s798, 4
          %s802 = int_to_ptr.hbm [resolvable:$true] %s801
          %807 = dma.vmem_to_hbm [thread:$0]  %s800, 1024, %s802, %s780, 128, 128, 8
        $region48: #{self_attention_pallas.3} parent=43 // pred_fallthru
          _
        // Predicated region
        $region49: #{self_attention_pallas.3} parent=43 // pred_check
          %p808 = pneg %p229
        $region50: #{self_attention_pallas.3} parent=43 // pred_check_branch
          %810 = sbr.rel (%p808) target = $region52
        $region51: #{self_attention_pallas.3} parent=43 // pred_region
          %s811 = smul.u32 8, %s31
          %813 = vsyncadd %s785, 0
          %s814 = smul.addr %s30, 8
          %s815 = sadd.s32 %s811, %s814
          %s816 = smul.addr %s815, 8
          %s817 = scalar_lea.hbm %s7, %s816
          %s818 = sshll.u32 %s788, 4
          %s819 = int_to_ptr.vmem [resolvable:$true] %s818
          %s820 = sshll.u32 %s817, 4
          %s821 = int_to_ptr.hbm [resolvable:$true] %s820
          %826 = dma.vmem_to_hbm [thread:$0]  %s819, 1024, %s821, %s785, 128, 128, 8
        $region52: #{self_attention_pallas.3} parent=43 // pred_fallthru
          _
      $region44: #{self_attention_pallas.3} parent=5 // pred_fallthru
        _
      %p827 = scmp.le.s32.totalorder 2, %s21
      // Predicated region
      $region53: #{self_attention_pallas.3} parent=5 // pred_check
        %p828 = pneg %p827
      $region54: #{self_attention_pallas.3} parent=5 // pred_check_branch
        %830 = sbr.rel (%p828) target = $region56
      $region55: #{self_attention_pallas.3} parent=5 // pred_region
        %s831 = ssub.s32 %s21, 2
        // Predicated region
        $region57: #{self_attention_pallas.3} parent=55 // pred_check
          %p832 = pneg %p207
        $region58: #{self_attention_pallas.3} parent=55 // pred_check_branch
          %834 = sbr.rel (%p832) target = $region60
        $region59: #{self_attention_pallas.3} parent=55 // pred_region
          %s835 = sand.u32 %s192, 1
          %s836 = scalar_lea.sflag [#allocation4], %s835
          %s837 = sand.u32 %s192, 1
          %s838 = smul.addr %s837, 64
          %s839 = scalar_lea.vmem [#allocation3], %s838
          %841 = dma.done %s836, 1024
        $region60: #{self_attention_pallas.3} parent=55 // pred_fallthru
          _
        // Predicated region
        $region61: #{self_attention_pallas.3} parent=55 // pred_check
          %p842 = pneg %p235
        $region62: #{self_attention_pallas.3} parent=55 // pred_check_branch
          %844 = sbr.rel (%p842) target = $region64
        $region63: #{self_attention_pallas.3} parent=55 // pred_region
          %s845 = sand.u32 %s220, 1
          %s846 = scalar_lea.sflag [#allocation6], %s845
          %s847 = sand.u32 %s220, 1
          %s848 = smul.addr %s847, 64
          %s849 = scalar_lea.vmem [#allocation5], %s848
          %851 = dma.done %s846, 1024
        $region64: #{self_attention_pallas.3} parent=55 // pred_fallthru
          _
      $region56: #{self_attention_pallas.3} parent=5 // pred_fallthru
        _
    $region6: #{self_attention_pallas.3} parent=1 // loop_footer
      %s25 = sadd.s32 1, %s21
    $region7: #{self_attention_pallas.3} parent=1 // loop_footer_branch
      %20 = sbr.rel target = $region3
    $region8: #{self_attention_pallas.3} parent=1 // loop_exit
      _
    %852 = vsyncpa [#allocation4], 1
    %s853 = scalar_lea.sflag [#allocation4], 1
    %854 = vsyncpa %s853, 1
    %855 = vsyncpa [#allocation6], 1
    %s856 = scalar_lea.sflag [#allocation6], 1
    %857 = vsyncpa %s856, 1

</llo_original>
